<compile_context>
chip_gen: v5e
topology: v5e:2x2
jax: 0.10.0
libtpu: 0.0.40
codegen_flags: <defaults>
</compile_context>

<pallas_src>
import numpy as np

import jax
import jax.numpy as jnp
from jax.experimental import pallas as pl


_NEG_SLOPE = 0.01  # F.leaky_relu default


def _leaky(v):
    return jnp.where(v >= 0.0, v, v * _NEG_SLOPE)


# ---------------------------------------------------------------------------
# Fused whole-network Pallas kernel
# ---------------------------------------------------------------------------
def _sel_conv(s_ref, w_ref, b_ref, h):
    """One conv layer on an activation matrix h (rows=(n, y, x), cols=cin).

    s_ref: (KK, rows_out, rows_in)  0/1 row-selection matrix per kernel pos.
    w_ref: (KK, cin, cout)          matching weight slice per kernel pos.
    b_ref: (1, cout)
    Returns the (rows_out, cout) pre-activation.  The patch gather is done as
    a matmul so the whole layer stays on the MXU (no strided loads/reshapes).
    """
    kk, rows_out, _ = s_ref.shape
    cout = w_ref.shape[2]
    acc = jnp.zeros((rows_out, cout), jnp.float32)
    for k in range(kk):  # static unroll (<= 16 iterations)
        gathered = jnp.dot(s_ref[k], h, preferred_element_type=jnp.float32)
        acc = acc + jnp.dot(gathered, w_ref[k],
                            preferred_element_type=jnp.float32)
    return acc + b_ref[...]


def _fused_forward_kernel(p1_ref, w1_ref, b1_ref,
                          s2_ref, w2_ref, b2_ref,
                          s3_ref, w3_ref, b3_ref,
                          s4_ref, w4_ref, b4_ref,
                          o_ref):
    # conv1 (x/255 folded into w1): one big MXU matmul on the patch matrix.
    h = _leaky(jnp.dot(p1_ref[...], w1_ref[...],
                       preferred_element_type=jnp.float32) + b1_ref[...])
    # conv2 + conv3 (leaky relu), then fc (no activation) — all VMEM-resident.
    h = _leaky(_sel_conv(s2_ref, w2_ref, b2_ref, h))
    h = _leaky(_sel_conv(s3_ref, w3_ref, b3_ref, h))
    o_ref[...] = _sel_conv(s4_ref, w4_ref, b4_ref, h).astype(o_ref.dtype)


# ---------------------------------------------------------------------------
# Host-side (one-time) precomputation of selection matrices / folded weights
# ---------------------------------------------------------------------------
def _selection_and_weights(batch, hin, win, cin, w_oihw, stride):
    """Build per-kernel-position row-selection matrices + weight slices for a
    conv layer acting on an NHWC-flattened activation matrix (rows=(n,y,x))."""
    cout, cin_w, kh, kw = w_oihw.shape
    assert cin_w == cin
    ho = (hin - kh) // stride + 1
    wo = (win - kw) // stride + 1
    rows_in = batch * hin * win
    rows_out = batch * ho * wo
    sel = np.zeros((kh * kw, rows_out, rows_in), dtype=np.float32)
    for ki in range(kh):
        for kj in range(kw):
            k = ki * kw + kj
            for b in range(batch):
                for oy in range(ho):
                    for ox in range(wo):
                        p = (b * ho + oy) * wo + ox
                        r = ((b * hin + oy * stride + ki) * win
                             + (ox * stride + kj))
                        sel[k, p, r] = 1.0
    # w_stack[k, cin, cout] = w[cout, cin, ki, kj]
    w_stack = jnp.transpose(w_oihw, (2, 3, 1, 0)).reshape(kh * kw, cin, cout)
    return jnp.asarray(sel), w_stack.astype(jnp.float32), ho, wo


def build_feature_extractor(params, input_shape, batch):
    """Precompute folded weights / selection matrices; return a jitted fwd."""
    cin, h, w = input_shape

    # --- conv1: big patch matmul; patches built in glue ----------------------
    w1 = params["w1"]
    cout1, _, kh1, kw1 = w1.shape
    stride1 = 4
    ho1 = (h - kh1) // stride1 + 1
    wo1 = (w - kw1) // stride1 + 1
    # Glue patch feature order is (ki, kj, cin); fold the 1/255 into the weight.
    w1_mat = (jnp.transpose(w1, (0, 2, 3, 1)).reshape(cout1, kh1 * kw1 * cin).T
              / 255.0).astype(jnp.float32)
    b1_mat = params["b1"].reshape(1, cout1).astype(jnp.float32)

    # --- conv2 / conv3: in-kernel selection-matmul layers ---------------------
    s2, w2_stack, ho2, wo2 = _selection_and_weights(
        batch, ho1, wo1, cout1, params["w2"], stride=2)
    b2_mat = params["b2"].reshape(1, -1).astype(jnp.float32)
    cout2 = params["w2"].shape[0]

    s3, w3_stack, ho3, wo3 = _selection_and_weights(
        batch, ho2, wo2, cout2, params["w3"], stride=1)
    b3_mat = params["b3"].reshape(1, -1).astype(jnp.float32)
    cout3 = params["w3"].shape[0]

    # --- fc: a "conv" whose kernel covers the whole remaining spatial extent.
    # This folds torch's NCHW .view(N, -1) permutation into the fc weights, so
    # no transpose back to NCHW is ever needed.
    feat = params["w_fc"].shape[0]
    wfc_as_conv = params["w_fc"].reshape(feat, cout3, ho3, wo3)
    s4, w4_stack, ho4, wo4 = _selection_and_weights(
        batch, ho3, wo3, cout3, wfc_as_conv, stride=1)
    assert ho4 == 1 and wo4 == 1
    b4_mat = params["b_fc"].reshape(1, feat).astype(jnp.float32)

    # Single whole-array-block pallas_call; everything (~1 MiB of operands)
    # fits comfortably in VMEM on v5e/v6e/v7x.
    # TODO(synk): for large batch, add an M-tiled "parallel" grid over the
    # conv1 patch rows (tile 256-512) and cast inputs to bf16 on v6e/v7x.
    fused = pl.pallas_call(
        _fused_forward_kernel,
        out_shape=jax.ShapeDtypeStruct((batch, feat), jnp.float32),
    )

    def forward(x):
        # NCHW -> NHWC once; im2col for conv1 only (fused slice/stack, no big
        # transpose: features come out in (ki, kj, cin) order by construction).
        xh = jnp.transpose(x, (0, 2, 3, 1)).astype(jnp.float32)
        cols = [
            xh[:, ki:ki + stride1 * (ho1 - 1) + 1:stride1,
                  kj:kj + stride1 * (wo1 - 1) + 1:stride1, :]
            for ki in range(kh1) for kj in range(kw1)
        ]
        p1 = jnp.stack(cols, axis=3).reshape(batch * ho1 * wo1,
                                             kh1 * kw1 * cin)
        return fused(p1, w1_mat, b1_mat,
                     s2, w2_stack, b2_mat,
                     s3, w3_stack, b3_mat,
                     s4, w4_stack, b4_mat)

    return jax.jit(forward)


# ---------------------------------------------------------------------------
# Pure-JAX reference for correctness checking
# ---------------------------------------------------------------------------
def _ref_forward(x, params):
    def leaky(v):
        return jnp.where(v >= 0, v, _NEG_SLOPE * v)

    def conv(v, w, b, stride):
        y = jax.lax.conv_general_dilated(
            v, w, window_strides=(stride, stride), padding="VALID",
            dimension_numbers=("NCHW", "OIHW", "NCHW"))
        return y + b.reshape(1, -1, 1, 1)

    v = x / 255.0
    v = leaky(conv(v, params["w1"], params["b1"], 4))
    v = leaky(conv(v, params["w2"], params["b2"], 2))
    v = leaky(conv(v, params["w3"], params["b3"], 1))
    v = v.reshape(v.shape[0], -1)
    return v @ params["w_fc"].T + params["b_fc"]


# ---------------------------------------------------------------------------
# Main
# ---------------------------------------------------------------------------
if __name__ == "__main__":
    # Small shapes consistent with the module:
    # input_shape = (4, 36, 36): conv1 -> 8x8, conv2 -> 3x3, conv3 -> 1x1
    # => conv_size = 64 * 1 * 1 = 64
    input_shape = (4, 36, 36)
    feature_size = 32
    batch = 2
    conv_size = 64

    key = jax.random.PRNGKey(0)
    ks = jax.random.split(key, 9)

    def init_w(k, shape, fan_in):
        bound = 1.0 / jnp.sqrt(fan_in)
        return jax.random.uniform(k, shape, jnp.float32, -bound, bound)

    params = {
        "w1": init_w(ks[0], (32, 4, 8, 8), 4 * 8 * 8),
        "b1": init_w(ks[1], (32,), 4 * 8 * 8),
        "w2": init_w(ks[2], (64, 32, 4, 4), 32 * 4 * 4),
        "b2": init_w(ks[3], (64,), 32 * 4 * 4),
        "w3": init_w(ks[4], (64, 64, 3, 3), 64 * 3 * 3),
        "b3": init_w(ks[5], (64,), 64 * 3 * 3),
        "w_fc": init_w(ks[6], (feature_size, conv_size), conv_size),
        "b_fc": init_w(ks[7], (feature_size,), conv_size),
    }

    # Deterministic example input (pixel-like values in [0, 255]).
    x = jax.random.uniform(ks[8], (batch,) + input_shape, jnp.float32,
                           0.0, 255.0)

    forward = build_feature_extractor(params, input_shape, batch)
    out = jax.block_until_ready(forward(x))

    ref = _ref_forward(x, params)
    assert out.shape == (batch, feature_size), out.shape
    assert jnp.allclose(out, ref, rtol=1e-3, atol=1e-3), (
        float(jnp.max(jnp.abs(out - ref))))

    print("KERNEL_OK")
</pallas_src>

<mosaic_0001>
module attributes {stable_mosaic.version = 11 : i64} {
  func.func @_fused_forward_kernel(%arg0: memref<128x256xf32, #tpu.memory_space<vmem>>, %arg1: memref<256x32xf32, #tpu.memory_space<vmem>>, %arg2: memref<1x32xf32, #tpu.memory_space<vmem>>, %arg3: memref<16x18x128xf32, #tpu.memory_space<vmem>>, %arg4: memref<16x32x64xf32, #tpu.memory_space<vmem>>, %arg5: memref<1x64xf32, #tpu.memory_space<vmem>>, %arg6: memref<9x2x18xf32, #tpu.memory_space<vmem>>, %arg7: memref<9x64x64xf32, #tpu.memory_space<vmem>>, %arg8: memref<1x64xf32, #tpu.memory_space<vmem>>, %arg9: memref<1x2x2xf32, #tpu.memory_space<vmem>>, %arg10: memref<1x64x32xf32, #tpu.memory_space<vmem>>, %arg11: memref<1x32xf32, #tpu.memory_space<vmem>>, %arg12: memref<2x32xf32, #tpu.memory_space<vmem>>) attributes {dimension_semantics = [], scalar_prefetch = 0 : i64, scratch_operands = 0 : i64, tpu.core_type = #tpu.core_type<tc>} {
    %c0 = arith.constant 0 : index
    %c0_0 = arith.constant 0 : index
    %0 = vector.load %arg0[%c0, %c0_0] : memref<128x256xf32, #tpu.memory_space<vmem>>, vector<128x256xf32>
    %c0_1 = arith.constant 0 : index
    %c0_2 = arith.constant 0 : index
    %1 = vector.load %arg1[%c0_1, %c0_2] : memref<256x32xf32, #tpu.memory_space<vmem>>, vector<256x32xf32>
    %cst = arith.constant dense<0.000000e+00> : vector<128x32xf32>
    %2 = tpu.matmul %0, %1, %cst {dimension_numbers = #tpu.dot_dimension_numbers<[1], [0], [0], [1], [0, 0, 1, 1], [], []>} : vector<128x256xf32>, vector<256x32xf32>, vector<128x32xf32> -> vector<128x32xf32>
    %c0_3 = arith.constant 0 : index
    %c0_4 = arith.constant 0 : index
    %3 = vector.load %arg2[%c0_3, %c0_4] : memref<1x32xf32, #tpu.memory_space<vmem>>, vector<1x32xf32>
    %4 = vector.broadcast %3 : vector<1x32xf32> to vector<128x32xf32>
    %5 = arith.addf %2, %4 : vector<128x32xf32>
    %cst_5 = arith.constant 0.000000e+00 : f32
    %6 = vector.broadcast %cst_5 : f32 to vector<128x32xf32>
    %7 = arith.cmpf oge, %5, %6 : vector<128x32xf32>
    %cst_6 = arith.constant 0.00999999977 : f32
    %8 = vector.broadcast %cst_6 : f32 to vector<128x32xf32>
    %9 = arith.mulf %5, %8 : vector<128x32xf32>
    %10 = arith.select %7, %5, %9 : vector<128x32xi1>, vector<128x32xf32>
    %cst_7 = arith.constant 0.000000e+00 : f32
    %11 = vector.broadcast %cst_7 : f32 to vector<18x64xf32>
    %c0_8 = arith.constant 0 : index
    %c0_9 = arith.constant 0 : index
    %c0_10 = arith.constant 0 : index
    %12 = vector.load %arg3[%c0_8, %c0_9, %c0_10] : memref<16x18x128xf32, #tpu.memory_space<vmem>>, vector<1x18x128xf32>
    %13 = vector.shape_cast %12 : vector<1x18x128xf32> to vector<18x128xf32>
    %cst_11 = arith.constant dense<0.000000e+00> : vector<18x32xf32>
    %14 = tpu.matmul %13, %10, %cst_11 {dimension_numbers = #tpu.dot_dimension_numbers<[1], [0], [0], [1], [0, 0, 1, 1], [], []>} : vector<18x128xf32>, vector<128x32xf32>, vector<18x32xf32> -> vector<18x32xf32>
    %c0_12 = arith.constant 0 : index
    %c0_13 = arith.constant 0 : index
    %c0_14 = arith.constant 0 : index
    %15 = vector.load %arg4[%c0_12, %c0_13, %c0_14] : memref<16x32x64xf32, #tpu.memory_space<vmem>>, vector<1x32x64xf32>
    %16 = vector.shape_cast %15 : vector<1x32x64xf32> to vector<32x64xf32>
    %cst_15 = arith.constant dense<0.000000e+00> : vector<18x64xf32>
    %17 = tpu.matmul %14, %16, %cst_15 {dimension_numbers = #tpu.dot_dimension_numbers<[1], [0], [0], [1], [0, 0, 1, 1], [], []>} : vector<18x32xf32>, vector<32x64xf32>, vector<18x64xf32> -> vector<18x64xf32>
    %18 = arith.addf %11, %17 : vector<18x64xf32>
    %c1 = arith.constant 1 : index
    %c0_16 = arith.constant 0 : index
    %c0_17 = arith.constant 0 : index
    %19 = vector.load %arg3[%c1, %c0_16, %c0_17] : memref<16x18x128xf32, #tpu.memory_space<vmem>>, vector<1x18x128xf32>
    %20 = vector.shape_cast %19 : vector<1x18x128xf32> to vector<18x128xf32>
    %cst_18 = arith.constant dense<0.000000e+00> : vector<18x32xf32>
    %21 = tpu.matmul %20, %10, %cst_18 {dimension_numbers = #tpu.dot_dimension_numbers<[1], [0], [0], [1], [0, 0, 1, 1], [], []>} : vector<18x128xf32>, vector<128x32xf32>, vector<18x32xf32> -> vector<18x32xf32>
    %c1_19 = arith.constant 1 : index
    %c0_20 = arith.constant 0 : index
    %c0_21 = arith.constant 0 : index
    %22 = vector.load %arg4[%c1_19, %c0_20, %c0_21] : memref<16x32x64xf32, #tpu.memory_space<vmem>>, vector<1x32x64xf32>
    %23 = vector.shape_cast %22 : vector<1x32x64xf32> to vector<32x64xf32>
    %cst_22 = arith.constant dense<0.000000e+00> : vector<18x64xf32>
    %24 = tpu.matmul %21, %23, %cst_22 {dimension_numbers = #tpu.dot_dimension_numbers<[1], [0], [0], [1], [0, 0, 1, 1], [], []>} : vector<18x32xf32>, vector<32x64xf32>, vector<18x64xf32> -> vector<18x64xf32>
    %25 = arith.addf %18, %24 : vector<18x64xf32>
    %c2 = arith.constant 2 : index
    %c0_23 = arith.constant 0 : index
    %c0_24 = arith.constant 0 : index
    %26 = vector.load %arg3[%c2, %c0_23, %c0_24] : memref<16x18x128xf32, #tpu.memory_space<vmem>>, vector<1x18x128xf32>
    %27 = vector.shape_cast %26 : vector<1x18x128xf32> to vector<18x128xf32>
    %cst_25 = arith.constant dense<0.000000e+00> : vector<18x32xf32>
    %28 = tpu.matmul %27, %10, %cst_25 {dimension_numbers = #tpu.dot_dimension_numbers<[1], [0], [0], [1], [0, 0, 1, 1], [], []>} : vector<18x128xf32>, vector<128x32xf32>, vector<18x32xf32> -> vector<18x32xf32>
    %c2_26 = arith.constant 2 : index
    %c0_27 = arith.constant 0 : index
    %c0_28 = arith.constant 0 : index
    %29 = vector.load %arg4[%c2_26, %c0_27, %c0_28] : memref<16x32x64xf32, #tpu.memory_space<vmem>>, vector<1x32x64xf32>
    %30 = vector.shape_cast %29 : vector<1x32x64xf32> to vector<32x64xf32>
    %cst_29 = arith.constant dense<0.000000e+00> : vector<18x64xf32>
    %31 = tpu.matmul %28, %30, %cst_29 {dimension_numbers = #tpu.dot_dimension_numbers<[1], [0], [0], [1], [0, 0, 1, 1], [], []>} : vector<18x32xf32>, vector<32x64xf32>, vector<18x64xf32> -> vector<18x64xf32>
    %32 = arith.addf %25, %31 : vector<18x64xf32>
    %c3 = arith.constant 3 : index
    %c0_30 = arith.constant 0 : index
    %c0_31 = arith.constant 0 : index
    %33 = vector.load %arg3[%c3, %c0_30, %c0_31] : memref<16x18x128xf32, #tpu.memory_space<vmem>>, vector<1x18x128xf32>
    %34 = vector.shape_cast %33 : vector<1x18x128xf32> to vector<18x128xf32>
    %cst_32 = arith.constant dense<0.000000e+00> : vector<18x32xf32>
    %35 = tpu.matmul %34, %10, %cst_32 {dimension_numbers = #tpu.dot_dimension_numbers<[1], [0], [0], [1], [0, 0, 1, 1], [], []>} : vector<18x128xf32>, vector<128x32xf32>, vector<18x32xf32> -> vector<18x32xf32>
    %c3_33 = arith.constant 3 : index
    %c0_34 = arith.constant 0 : index
    %c0_35 = arith.constant 0 : index
    %36 = vector.load %arg4[%c3_33, %c0_34, %c0_35] : memref<16x32x64xf32, #tpu.memory_space<vmem>>, vector<1x32x64xf32>
    %37 = vector.shape_cast %36 : vector<1x32x64xf32> to vector<32x64xf32>
    %cst_36 = arith.constant dense<0.000000e+00> : vector<18x64xf32>
    %38 = tpu.matmul %35, %37, %cst_36 {dimension_numbers = #tpu.dot_dimension_numbers<[1], [0], [0], [1], [0, 0, 1, 1], [], []>} : vector<18x32xf32>, vector<32x64xf32>, vector<18x64xf32> -> vector<18x64xf32>
    %39 = arith.addf %32, %38 : vector<18x64xf32>
    %c4 = arith.constant 4 : index
    %c0_37 = arith.constant 0 : index
    %c0_38 = arith.constant 0 : index
    %40 = vector.load %arg3[%c4, %c0_37, %c0_38] : memref<16x18x128xf32, #tpu.memory_space<vmem>>, vector<1x18x128xf32>
    %41 = vector.shape_cast %40 : vector<1x18x128xf32> to vector<18x128xf32>
    %cst_39 = arith.constant dense<0.000000e+00> : vector<18x32xf32>
    %42 = tpu.matmul %41, %10, %cst_39 {dimension_numbers = #tpu.dot_dimension_numbers<[1], [0], [0], [1], [0, 0, 1, 1], [], []>} : vector<18x128xf32>, vector<128x32xf32>, vector<18x32xf32> -> vector<18x32xf32>
    %c4_40 = arith.constant 4 : index
    %c0_41 = arith.constant 0 : index
    %c0_42 = arith.constant 0 : index
    %43 = vector.load %arg4[%c4_40, %c0_41, %c0_42] : memref<16x32x64xf32, #tpu.memory_space<vmem>>, vector<1x32x64xf32>
    %44 = vector.shape_cast %43 : vector<1x32x64xf32> to vector<32x64xf32>
    %cst_43 = arith.constant dense<0.000000e+00> : vector<18x64xf32>
    %45 = tpu.matmul %42, %44, %cst_43 {dimension_numbers = #tpu.dot_dimension_numbers<[1], [0], [0], [1], [0, 0, 1, 1], [], []>} : vector<18x32xf32>, vector<32x64xf32>, vector<18x64xf32> -> vector<18x64xf32>
    %46 = arith.addf %39, %45 : vector<18x64xf32>
    %c5 = arith.constant 5 : index
    %c0_44 = arith.constant 0 : index
    %c0_45 = arith.constant 0 : index
    %47 = vector.load %arg3[%c5, %c0_44, %c0_45] : memref<16x18x128xf32, #tpu.memory_space<vmem>>, vector<1x18x128xf32>
    %48 = vector.shape_cast %47 : vector<1x18x128xf32> to vector<18x128xf32>
    %cst_46 = arith.constant dense<0.000000e+00> : vector<18x32xf32>
    %49 = tpu.matmul %48, %10, %cst_46 {dimension_numbers = #tpu.dot_dimension_numbers<[1], [0], [0], [1], [0, 0, 1, 1], [], []>} : vector<18x128xf32>, vector<128x32xf32>, vector<18x32xf32> -> vector<18x32xf32>
    %c5_47 = arith.constant 5 : index
    %c0_48 = arith.constant 0 : index
    %c0_49 = arith.constant 0 : index
    %50 = vector.load %arg4[%c5_47, %c0_48, %c0_49] : memref<16x32x64xf32, #tpu.memory_space<vmem>>, vector<1x32x64xf32>
    %51 = vector.shape_cast %50 : vector<1x32x64xf32> to vector<32x64xf32>
    %cst_50 = arith.constant dense<0.000000e+00> : vector<18x64xf32>
    %52 = tpu.matmul %49, %51, %cst_50 {dimension_numbers = #tpu.dot_dimension_numbers<[1], [0], [0], [1], [0, 0, 1, 1], [], []>} : vector<18x32xf32>, vector<32x64xf32>, vector<18x64xf32> -> vector<18x64xf32>
    %53 = arith.addf %46, %52 : vector<18x64xf32>
    %c6 = arith.constant 6 : index
    %c0_51 = arith.constant 0 : index
    %c0_52 = arith.constant 0 : index
    %54 = vector.load %arg3[%c6, %c0_51, %c0_52] : memref<16x18x128xf32, #tpu.memory_space<vmem>>, vector<1x18x128xf32>
    %55 = vector.shape_cast %54 : vector<1x18x128xf32> to vector<18x128xf32>
    %cst_53 = arith.constant dense<0.000000e+00> : vector<18x32xf32>
    %56 = tpu.matmul %55, %10, %cst_53 {dimension_numbers = #tpu.dot_dimension_numbers<[1], [0], [0], [1], [0, 0, 1, 1], [], []>} : vector<18x128xf32>, vector<128x32xf32>, vector<18x32xf32> -> vector<18x32xf32>
    %c6_54 = arith.constant 6 : index
    %c0_55 = arith.constant 0 : index
    %c0_56 = arith.constant 0 : index
    %57 = vector.load %arg4[%c6_54, %c0_55, %c0_56] : memref<16x32x64xf32, #tpu.memory_space<vmem>>, vector<1x32x64xf32>
    %58 = vector.shape_cast %57 : vector<1x32x64xf32> to vector<32x64xf32>
    %cst_57 = arith.constant dense<0.000000e+00> : vector<18x64xf32>
    %59 = tpu.matmul %56, %58, %cst_57 {dimension_numbers = #tpu.dot_dimension_numbers<[1], [0], [0], [1], [0, 0, 1, 1], [], []>} : vector<18x32xf32>, vector<32x64xf32>, vector<18x64xf32> -> vector<18x64xf32>
    %60 = arith.addf %53, %59 : vector<18x64xf32>
    %c7 = arith.constant 7 : index
    %c0_58 = arith.constant 0 : index
    %c0_59 = arith.constant 0 : index
    %61 = vector.load %arg3[%c7, %c0_58, %c0_59] : memref<16x18x128xf32, #tpu.memory_space<vmem>>, vector<1x18x128xf32>
    %62 = vector.shape_cast %61 : vector<1x18x128xf32> to vector<18x128xf32>
    %cst_60 = arith.constant dense<0.000000e+00> : vector<18x32xf32>
    %63 = tpu.matmul %62, %10, %cst_60 {dimension_numbers = #tpu.dot_dimension_numbers<[1], [0], [0], [1], [0, 0, 1, 1], [], []>} : vector<18x128xf32>, vector<128x32xf32>, vector<18x32xf32> -> vector<18x32xf32>
    %c7_61 = arith.constant 7 : index
    %c0_62 = arith.constant 0 : index
    %c0_63 = arith.constant 0 : index
    %64 = vector.load %arg4[%c7_61, %c0_62, %c0_63] : memref<16x32x64xf32, #tpu.memory_space<vmem>>, vector<1x32x64xf32>
    %65 = vector.shape_cast %64 : vector<1x32x64xf32> to vector<32x64xf32>
    %cst_64 = arith.constant dense<0.000000e+00> : vector<18x64xf32>
    %66 = tpu.matmul %63, %65, %cst_64 {dimension_numbers = #tpu.dot_dimension_numbers<[1], [0], [0], [1], [0, 0, 1, 1], [], []>} : vector<18x32xf32>, vector<32x64xf32>, vector<18x64xf32> -> vector<18x64xf32>
    %67 = arith.addf %60, %66 : vector<18x64xf32>
    %c8 = arith.constant 8 : index
    %c0_65 = arith.constant 0 : index
    %c0_66 = arith.constant 0 : index
    %68 = vector.load %arg3[%c8, %c0_65, %c0_66] : memref<16x18x128xf32, #tpu.memory_space<vmem>>, vector<1x18x128xf32>
    %69 = vector.shape_cast %68 : vector<1x18x128xf32> to vector<18x128xf32>
    %cst_67 = arith.constant dense<0.000000e+00> : vector<18x32xf32>
    %70 = tpu.matmul %69, %10, %cst_67 {dimension_numbers = #tpu.dot_dimension_numbers<[1], [0], [0], [1], [0, 0, 1, 1], [], []>} : vector<18x128xf32>, vector<128x32xf32>, vector<18x32xf32> -> vector<18x32xf32>
    %c8_68 = arith.constant 8 : index
    %c0_69 = arith.constant 0 : index
    %c0_70 = arith.constant 0 : index
    %71 = vector.load %arg4[%c8_68, %c0_69, %c0_70] : memref<16x32x64xf32, #tpu.memory_space<vmem>>, vector<1x32x64xf32>
    %72 = vector.shape_cast %71 : vector<1x32x64xf32> to vector<32x64xf32>
    %cst_71 = arith.constant dense<0.000000e+00> : vector<18x64xf32>
    %73 = tpu.matmul %70, %72, %cst_71 {dimension_numbers = #tpu.dot_dimension_numbers<[1], [0], [0], [1], [0, 0, 1, 1], [], []>} : vector<18x32xf32>, vector<32x64xf32>, vector<18x64xf32> -> vector<18x64xf32>
    %74 = arith.addf %67, %73 : vector<18x64xf32>
    %c9 = arith.constant 9 : index
    %c0_72 = arith.constant 0 : index
    %c0_73 = arith.constant 0 : index
    %75 = vector.load %arg3[%c9, %c0_72, %c0_73] : memref<16x18x128xf32, #tpu.memory_space<vmem>>, vector<1x18x128xf32>
    %76 = vector.shape_cast %75 : vector<1x18x128xf32> to vector<18x128xf32>
    %cst_74 = arith.constant dense<0.000000e+00> : vector<18x32xf32>
    %77 = tpu.matmul %76, %10, %cst_74 {dimension_numbers = #tpu.dot_dimension_numbers<[1], [0], [0], [1], [0, 0, 1, 1], [], []>} : vector<18x128xf32>, vector<128x32xf32>, vector<18x32xf32> -> vector<18x32xf32>
    %c9_75 = arith.constant 9 : index
    %c0_76 = arith.constant 0 : index
    %c0_77 = arith.constant 0 : index
    %78 = vector.load %arg4[%c9_75, %c0_76, %c0_77] : memref<16x32x64xf32, #tpu.memory_space<vmem>>, vector<1x32x64xf32>
    %79 = vector.shape_cast %78 : vector<1x32x64xf32> to vector<32x64xf32>
    %cst_78 = arith.constant dense<0.000000e+00> : vector<18x64xf32>
    %80 = tpu.matmul %77, %79, %cst_78 {dimension_numbers = #tpu.dot_dimension_numbers<[1], [0], [0], [1], [0, 0, 1, 1], [], []>} : vector<18x32xf32>, vector<32x64xf32>, vector<18x64xf32> -> vector<18x64xf32>
    %81 = arith.addf %74, %80 : vector<18x64xf32>
    %c10 = arith.constant 10 : index
    %c0_79 = arith.constant 0 : index
    %c0_80 = arith.constant 0 : index
    %82 = vector.load %arg3[%c10, %c0_79, %c0_80] : memref<16x18x128xf32, #tpu.memory_space<vmem>>, vector<1x18x128xf32>
    %83 = vector.shape_cast %82 : vector<1x18x128xf32> to vector<18x128xf32>
    %cst_81 = arith.constant dense<0.000000e+00> : vector<18x32xf32>
    %84 = tpu.matmul %83, %10, %cst_81 {dimension_numbers = #tpu.dot_dimension_numbers<[1], [0], [0], [1], [0, 0, 1, 1], [], []>} : vector<18x128xf32>, vector<128x32xf32>, vector<18x32xf32> -> vector<18x32xf32>
    %c10_82 = arith.constant 10 : index
    %c0_83 = arith.constant 0 : index
    %c0_84 = arith.constant 0 : index
    %85 = vector.load %arg4[%c10_82, %c0_83, %c0_84] : memref<16x32x64xf32, #tpu.memory_space<vmem>>, vector<1x32x64xf32>
    %86 = vector.shape_cast %85 : vector<1x32x64xf32> to vector<32x64xf32>
    %cst_85 = arith.constant dense<0.000000e+00> : vector<18x64xf32>
    %87 = tpu.matmul %84, %86, %cst_85 {dimension_numbers = #tpu.dot_dimension_numbers<[1], [0], [0], [1], [0, 0, 1, 1], [], []>} : vector<18x32xf32>, vector<32x64xf32>, vector<18x64xf32> -> vector<18x64xf32>
    %88 = arith.addf %81, %87 : vector<18x64xf32>
    %c11 = arith.constant 11 : index
    %c0_86 = arith.constant 0 : index
    %c0_87 = arith.constant 0 : index
    %89 = vector.load %arg3[%c11, %c0_86, %c0_87] : memref<16x18x128xf32, #tpu.memory_space<vmem>>, vector<1x18x128xf32>
    %90 = vector.shape_cast %89 : vector<1x18x128xf32> to vector<18x128xf32>
    %cst_88 = arith.constant dense<0.000000e+00> : vector<18x32xf32>
    %91 = tpu.matmul %90, %10, %cst_88 {dimension_numbers = #tpu.dot_dimension_numbers<[1], [0], [0], [1], [0, 0, 1, 1], [], []>} : vector<18x128xf32>, vector<128x32xf32>, vector<18x32xf32> -> vector<18x32xf32>
    %c11_89 = arith.constant 11 : index
    %c0_90 = arith.constant 0 : index
    %c0_91 = arith.constant 0 : index
    %92 = vector.load %arg4[%c11_89, %c0_90, %c0_91] : memref<16x32x64xf32, #tpu.memory_space<vmem>>, vector<1x32x64xf32>
    %93 = vector.shape_cast %92 : vector<1x32x64xf32> to vector<32x64xf32>
    %cst_92 = arith.constant dense<0.000000e+00> : vector<18x64xf32>
    %94 = tpu.matmul %91, %93, %cst_92 {dimension_numbers = #tpu.dot_dimension_numbers<[1], [0], [0], [1], [0, 0, 1, 1], [], []>} : vector<18x32xf32>, vector<32x64xf32>, vector<18x64xf32> -> vector<18x64xf32>
    %95 = arith.addf %88, %94 : vector<18x64xf32>
    %c12 = arith.constant 12 : index
    %c0_93 = arith.constant 0 : index
    %c0_94 = arith.constant 0 : index
    %96 = vector.load %arg3[%c12, %c0_93, %c0_94] : memref<16x18x128xf32, #tpu.memory_space<vmem>>, vector<1x18x128xf32>
    %97 = vector.shape_cast %96 : vector<1x18x128xf32> to vector<18x128xf32>
    %cst_95 = arith.constant dense<0.000000e+00> : vector<18x32xf32>
    %98 = tpu.matmul %97, %10, %cst_95 {dimension_numbers = #tpu.dot_dimension_numbers<[1], [0], [0], [1], [0, 0, 1, 1], [], []>} : vector<18x128xf32>, vector<128x32xf32>, vector<18x32xf32> -> vector<18x32xf32>
    %c12_96 = arith.constant 12 : index
    %c0_97 = arith.constant 0 : index
    %c0_98 = arith.constant 0 : index
    %99 = vector.load %arg4[%c12_96, %c0_97, %c0_98] : memref<16x32x64xf32, #tpu.memory_space<vmem>>, vector<1x32x64xf32>
    %100 = vector.shape_cast %99 : vector<1x32x64xf32> to vector<32x64xf32>
    %cst_99 = arith.constant dense<0.000000e+00> : vector<18x64xf32>
    %101 = tpu.matmul %98, %100, %cst_99 {dimension_numbers = #tpu.dot_dimension_numbers<[1], [0], [0], [1], [0, 0, 1, 1], [], []>} : vector<18x32xf32>, vector<32x64xf32>, vector<18x64xf32> -> vector<18x64xf32>
    %102 = arith.addf %95, %101 : vector<18x64xf32>
    %c13 = arith.constant 13 : index
    %c0_100 = arith.constant 0 : index
    %c0_101 = arith.constant 0 : index
    %103 = vector.load %arg3[%c13, %c0_100, %c0_101] : memref<16x18x128xf32, #tpu.memory_space<vmem>>, vector<1x18x128xf32>
    %104 = vector.shape_cast %103 : vector<1x18x128xf32> to vector<18x128xf32>
    %cst_102 = arith.constant dense<0.000000e+00> : vector<18x32xf32>
    %105 = tpu.matmul %104, %10, %cst_102 {dimension_numbers = #tpu.dot_dimension_numbers<[1], [0], [0], [1], [0, 0, 1, 1], [], []>} : vector<18x128xf32>, vector<128x32xf32>, vector<18x32xf32> -> vector<18x32xf32>
    %c13_103 = arith.constant 13 : index
    %c0_104 = arith.constant 0 : index
    %c0_105 = arith.constant 0 : index
    %106 = vector.load %arg4[%c13_103, %c0_104, %c0_105] : memref<16x32x64xf32, #tpu.memory_space<vmem>>, vector<1x32x64xf32>
    %107 = vector.shape_cast %106 : vector<1x32x64xf32> to vector<32x64xf32>
    %cst_106 = arith.constant dense<0.000000e+00> : vector<18x64xf32>
    %108 = tpu.matmul %105, %107, %cst_106 {dimension_numbers = #tpu.dot_dimension_numbers<[1], [0], [0], [1], [0, 0, 1, 1], [], []>} : vector<18x32xf32>, vector<32x64xf32>, vector<18x64xf32> -> vector<18x64xf32>
    %109 = arith.addf %102, %108 : vector<18x64xf32>
    %c14 = arith.constant 14 : index
    %c0_107 = arith.constant 0 : index
    %c0_108 = arith.constant 0 : index
    %110 = vector.load %arg3[%c14, %c0_107, %c0_108] : memref<16x18x128xf32, #tpu.memory_space<vmem>>, vector<1x18x128xf32>
    %111 = vector.shape_cast %110 : vector<1x18x128xf32> to vector<18x128xf32>
    %cst_109 = arith.constant dense<0.000000e+00> : vector<18x32xf32>
    %112 = tpu.matmul %111, %10, %cst_109 {dimension_numbers = #tpu.dot_dimension_numbers<[1], [0], [0], [1], [0, 0, 1, 1], [], []>} : vector<18x128xf32>, vector<128x32xf32>, vector<18x32xf32> -> vector<18x32xf32>
    %c14_110 = arith.constant 14 : index
    %c0_111 = arith.constant 0 : index
    %c0_112 = arith.constant 0 : index
    %113 = vector.load %arg4[%c14_110, %c0_111, %c0_112] : memref<16x32x64xf32, #tpu.memory_space<vmem>>, vector<1x32x64xf32>
    %114 = vector.shape_cast %113 : vector<1x32x64xf32> to vector<32x64xf32>
    %cst_113 = arith.constant dense<0.000000e+00> : vector<18x64xf32>
    %115 = tpu.matmul %112, %114, %cst_113 {dimension_numbers = #tpu.dot_dimension_numbers<[1], [0], [0], [1], [0, 0, 1, 1], [], []>} : vector<18x32xf32>, vector<32x64xf32>, vector<18x64xf32> -> vector<18x64xf32>
    %116 = arith.addf %109, %115 : vector<18x64xf32>
    %c15 = arith.constant 15 : index
    %c0_114 = arith.constant 0 : index
    %c0_115 = arith.constant 0 : index
    %117 = vector.load %arg3[%c15, %c0_114, %c0_115] : memref<16x18x128xf32, #tpu.memory_space<vmem>>, vector<1x18x128xf32>
    %118 = vector.shape_cast %117 : vector<1x18x128xf32> to vector<18x128xf32>
    %cst_116 = arith.constant dense<0.000000e+00> : vector<18x32xf32>
    %119 = tpu.matmul %118, %10, %cst_116 {dimension_numbers = #tpu.dot_dimension_numbers<[1], [0], [0], [1], [0, 0, 1, 1], [], []>} : vector<18x128xf32>, vector<128x32xf32>, vector<18x32xf32> -> vector<18x32xf32>
    %c15_117 = arith.constant 15 : index
    %c0_118 = arith.constant 0 : index
    %c0_119 = arith.constant 0 : index
    %120 = vector.load %arg4[%c15_117, %c0_118, %c0_119] : memref<16x32x64xf32, #tpu.memory_space<vmem>>, vector<1x32x64xf32>
    %121 = vector.shape_cast %120 : vector<1x32x64xf32> to vector<32x64xf32>
    %cst_120 = arith.constant dense<0.000000e+00> : vector<18x64xf32>
    %122 = tpu.matmul %119, %121, %cst_120 {dimension_numbers = #tpu.dot_dimension_numbers<[1], [0], [0], [1], [0, 0, 1, 1], [], []>} : vector<18x32xf32>, vector<32x64xf32>, vector<18x64xf32> -> vector<18x64xf32>
    %123 = arith.addf %116, %122 : vector<18x64xf32>
    %c0_121 = arith.constant 0 : index
    %c0_122 = arith.constant 0 : index
    %124 = vector.load %arg5[%c0_121, %c0_122] : memref<1x64xf32, #tpu.memory_space<vmem>>, vector<1x64xf32>
    %125 = vector.broadcast %124 : vector<1x64xf32> to vector<18x64xf32>
    %126 = arith.addf %123, %125 : vector<18x64xf32>
    %cst_123 = arith.constant 0.000000e+00 : f32
    %127 = vector.broadcast %cst_123 : f32 to vector<18x64xf32>
    %128 = arith.cmpf oge, %126, %127 : vector<18x64xf32>
    %cst_124 = arith.constant 0.00999999977 : f32
    %129 = vector.broadcast %cst_124 : f32 to vector<18x64xf32>
    %130 = arith.mulf %126, %129 : vector<18x64xf32>
    %131 = arith.select %128, %126, %130 : vector<18x64xi1>, vector<18x64xf32>
    %cst_125 = arith.constant 0.000000e+00 : f32
    %132 = vector.broadcast %cst_125 : f32 to vector<2x64xf32>
    %c0_126 = arith.constant 0 : index
    %c0_127 = arith.constant 0 : index
    %c0_128 = arith.constant 0 : index
    %133 = vector.load %arg6[%c0_126, %c0_127, %c0_128] : memref<9x2x18xf32, #tpu.memory_space<vmem>>, vector<1x2x18xf32>
    %134 = vector.shape_cast %133 : vector<1x2x18xf32> to vector<2x18xf32>
    %cst_129 = arith.constant dense<0.000000e+00> : vector<2x64xf32>
    %135 = tpu.matmul %134, %131, %cst_129 {dimension_numbers = #tpu.dot_dimension_numbers<[1], [0], [0], [1], [0, 0, 1, 1], [], []>} : vector<2x18xf32>, vector<18x64xf32>, vector<2x64xf32> -> vector<2x64xf32>
    %c0_130 = arith.constant 0 : index
    %c0_131 = arith.constant 0 : index
    %c0_132 = arith.constant 0 : index
    %136 = vector.load %arg7[%c0_130, %c0_131, %c0_132] : memref<9x64x64xf32, #tpu.memory_space<vmem>>, vector<1x64x64xf32>
    %137 = vector.shape_cast %136 : vector<1x64x64xf32> to vector<64x64xf32>
    %cst_133 = arith.constant dense<0.000000e+00> : vector<2x64xf32>
    %138 = tpu.matmul %135, %137, %cst_133 {dimension_numbers = #tpu.dot_dimension_numbers<[1], [0], [0], [1], [0, 0, 1, 1], [], []>} : vector<2x64xf32>, vector<64x64xf32>, vector<2x64xf32> -> vector<2x64xf32>
    %139 = arith.addf %132, %138 : vector<2x64xf32>
    %c1_134 = arith.constant 1 : index
    %c0_135 = arith.constant 0 : index
    %c0_136 = arith.constant 0 : index
    %140 = vector.load %arg6[%c1_134, %c0_135, %c0_136] : memref<9x2x18xf32, #tpu.memory_space<vmem>>, vector<1x2x18xf32>
    %141 = vector.shape_cast %140 : vector<1x2x18xf32> to vector<2x18xf32>
    %cst_137 = arith.constant dense<0.000000e+00> : vector<2x64xf32>
    %142 = tpu.matmul %141, %131, %cst_137 {dimension_numbers = #tpu.dot_dimension_numbers<[1], [0], [0], [1], [0, 0, 1, 1], [], []>} : vector<2x18xf32>, vector<18x64xf32>, vector<2x64xf32> -> vector<2x64xf32>
    %c1_138 = arith.constant 1 : index
    %c0_139 = arith.constant 0 : index
    %c0_140 = arith.constant 0 : index
    %143 = vector.load %arg7[%c1_138, %c0_139, %c0_140] : memref<9x64x64xf32, #tpu.memory_space<vmem>>, vector<1x64x64xf32>
    %144 = vector.shape_cast %143 : vector<1x64x64xf32> to vector<64x64xf32>
    %cst_141 = arith.constant dense<0.000000e+00> : vector<2x64xf32>
    %145 = tpu.matmul %142, %144, %cst_141 {dimension_numbers = #tpu.dot_dimension_numbers<[1], [0], [0], [1], [0, 0, 1, 1], [], []>} : vector<2x64xf32>, vector<64x64xf32>, vector<2x64xf32> -> vector<2x64xf32>
    %146 = arith.addf %139, %145 : vector<2x64xf32>
    %c2_142 = arith.constant 2 : index
    %c0_143 = arith.constant 0 : index
    %c0_144 = arith.constant 0 : index
    %147 = vector.load %arg6[%c2_142, %c0_143, %c0_144] : memref<9x2x18xf32, #tpu.memory_space<vmem>>, vector<1x2x18xf32>
    %148 = vector.shape_cast %147 : vector<1x2x18xf32> to vector<2x18xf32>
    %cst_145 = arith.constant dense<0.000000e+00> : vector<2x64xf32>
    %149 = tpu.matmul %148, %131, %cst_145 {dimension_numbers = #tpu.dot_dimension_numbers<[1], [0], [0], [1], [0, 0, 1, 1], [], []>} : vector<2x18xf32>, vector<18x64xf32>, vector<2x64xf32> -> vector<2x64xf32>
    %c2_146 = arith.constant 2 : index
    %c0_147 = arith.constant 0 : index
    %c0_148 = arith.constant 0 : index
    %150 = vector.load %arg7[%c2_146, %c0_147, %c0_148] : memref<9x64x64xf32, #tpu.memory_space<vmem>>, vector<1x64x64xf32>
    %151 = vector.shape_cast %150 : vector<1x64x64xf32> to vector<64x64xf32>
    %cst_149 = arith.constant dense<0.000000e+00> : vector<2x64xf32>
    %152 = tpu.matmul %149, %151, %cst_149 {dimension_numbers = #tpu.dot_dimension_numbers<[1], [0], [0], [1], [0, 0, 1, 1], [], []>} : vector<2x64xf32>, vector<64x64xf32>, vector<2x64xf32> -> vector<2x64xf32>
    %153 = arith.addf %146, %152 : vector<2x64xf32>
    %c3_150 = arith.constant 3 : index
    %c0_151 = arith.constant 0 : index
    %c0_152 = arith.constant 0 : index
    %154 = vector.load %arg6[%c3_150, %c0_151, %c0_152] : memref<9x2x18xf32, #tpu.memory_space<vmem>>, vector<1x2x18xf32>
    %155 = vector.shape_cast %154 : vector<1x2x18xf32> to vector<2x18xf32>
    %cst_153 = arith.constant dense<0.000000e+00> : vector<2x64xf32>
    %156 = tpu.matmul %155, %131, %cst_153 {dimension_numbers = #tpu.dot_dimension_numbers<[1], [0], [0], [1], [0, 0, 1, 1], [], []>} : vector<2x18xf32>, vector<18x64xf32>, vector<2x64xf32> -> vector<2x64xf32>
    %c3_154 = arith.constant 3 : index
    %c0_155 = arith.constant 0 : index
    %c0_156 = arith.constant 0 : index
    %157 = vector.load %arg7[%c3_154, %c0_155, %c0_156] : memref<9x64x64xf32, #tpu.memory_space<vmem>>, vector<1x64x64xf32>
    %158 = vector.shape_cast %157 : vector<1x64x64xf32> to vector<64x64xf32>
    %cst_157 = arith.constant dense<0.000000e+00> : vector<2x64xf32>
    %159 = tpu.matmul %156, %158, %cst_157 {dimension_numbers = #tpu.dot_dimension_numbers<[1], [0], [0], [1], [0, 0, 1, 1], [], []>} : vector<2x64xf32>, vector<64x64xf32>, vector<2x64xf32> -> vector<2x64xf32>
    %160 = arith.addf %153, %159 : vector<2x64xf32>
    %c4_158 = arith.constant 4 : index
    %c0_159 = arith.constant 0 : index
    %c0_160 = arith.constant 0 : index
    %161 = vector.load %arg6[%c4_158, %c0_159, %c0_160] : memref<9x2x18xf32, #tpu.memory_space<vmem>>, vector<1x2x18xf32>
    %162 = vector.shape_cast %161 : vector<1x2x18xf32> to vector<2x18xf32>
    %cst_161 = arith.constant dense<0.000000e+00> : vector<2x64xf32>
    %163 = tpu.matmul %162, %131, %cst_161 {dimension_numbers = #tpu.dot_dimension_numbers<[1], [0], [0], [1], [0, 0, 1, 1], [], []>} : vector<2x18xf32>, vector<18x64xf32>, vector<2x64xf32> -> vector<2x64xf32>
    %c4_162 = arith.constant 4 : index
    %c0_163 = arith.constant 0 : index
    %c0_164 = arith.constant 0 : index
    %164 = vector.load %arg7[%c4_162, %c0_163, %c0_164] : memref<9x64x64xf32, #tpu.memory_space<vmem>>, vector<1x64x64xf32>
    %165 = vector.shape_cast %164 : vector<1x64x64xf32> to vector<64x64xf32>
    %cst_165 = arith.constant dense<0.000000e+00> : vector<2x64xf32>
    %166 = tpu.matmul %163, %165, %cst_165 {dimension_numbers = #tpu.dot_dimension_numbers<[1], [0], [0], [1], [0, 0, 1, 1], [], []>} : vector<2x64xf32>, vector<64x64xf32>, vector<2x64xf32> -> vector<2x64xf32>
    %167 = arith.addf %160, %166 : vector<2x64xf32>
    %c5_166 = arith.constant 5 : index
    %c0_167 = arith.constant 0 : index
    %c0_168 = arith.constant 0 : index
    %168 = vector.load %arg6[%c5_166, %c0_167, %c0_168] : memref<9x2x18xf32, #tpu.memory_space<vmem>>, vector<1x2x18xf32>
    %169 = vector.shape_cast %168 : vector<1x2x18xf32> to vector<2x18xf32>
    %cst_169 = arith.constant dense<0.000000e+00> : vector<2x64xf32>
    %170 = tpu.matmul %169, %131, %cst_169 {dimension_numbers = #tpu.dot_dimension_numbers<[1], [0], [0], [1], [0, 0, 1, 1], [], []>} : vector<2x18xf32>, vector<18x64xf32>, vector<2x64xf32> -> vector<2x64xf32>
    %c5_170 = arith.constant 5 : index
    %c0_171 = arith.constant 0 : index
    %c0_172 = arith.constant 0 : index
    %171 = vector.load %arg7[%c5_170, %c0_171, %c0_172] : memref<9x64x64xf32, #tpu.memory_space<vmem>>, vector<1x64x64xf32>
    %172 = vector.shape_cast %171 : vector<1x64x64xf32> to vector<64x64xf32>
    %cst_173 = arith.constant dense<0.000000e+00> : vector<2x64xf32>
    %173 = tpu.matmul %170, %172, %cst_173 {dimension_numbers = #tpu.dot_dimension_numbers<[1], [0], [0], [1], [0, 0, 1, 1], [], []>} : vector<2x64xf32>, vector<64x64xf32>, vector<2x64xf32> -> vector<2x64xf32>
    %174 = arith.addf %167, %173 : vector<2x64xf32>
    %c6_174 = arith.constant 6 : index
    %c0_175 = arith.constant 0 : index
    %c0_176 = arith.constant 0 : index
    %175 = vector.load %arg6[%c6_174, %c0_175, %c0_176] : memref<9x2x18xf32, #tpu.memory_space<vmem>>, vector<1x2x18xf32>
    %176 = vector.shape_cast %175 : vector<1x2x18xf32> to vector<2x18xf32>
    %cst_177 = arith.constant dense<0.000000e+00> : vector<2x64xf32>
    %177 = tpu.matmul %176, %131, %cst_177 {dimension_numbers = #tpu.dot_dimension_numbers<[1], [0], [0], [1], [0, 0, 1, 1], [], []>} : vector<2x18xf32>, vector<18x64xf32>, vector<2x64xf32> -> vector<2x64xf32>
    %c6_178 = arith.constant 6 : index
    %c0_179 = arith.constant 0 : index
    %c0_180 = arith.constant 0 : index
    %178 = vector.load %arg7[%c6_178, %c0_179, %c0_180] : memref<9x64x64xf32, #tpu.memory_space<vmem>>, vector<1x64x64xf32>
    %179 = vector.shape_cast %178 : vector<1x64x64xf32> to vector<64x64xf32>
    %cst_181 = arith.constant dense<0.000000e+00> : vector<2x64xf32>
    %180 = tpu.matmul %177, %179, %cst_181 {dimension_numbers = #tpu.dot_dimension_numbers<[1], [0], [0], [1], [0, 0, 1, 1], [], []>} : vector<2x64xf32>, vector<64x64xf32>, vector<2x64xf32> -> vector<2x64xf32>
    %181 = arith.addf %174, %180 : vector<2x64xf32>
    %c7_182 = arith.constant 7 : index
    %c0_183 = arith.constant 0 : index
    %c0_184 = arith.constant 0 : index
    %182 = vector.load %arg6[%c7_182, %c0_183, %c0_184] : memref<9x2x18xf32, #tpu.memory_space<vmem>>, vector<1x2x18xf32>
    %183 = vector.shape_cast %182 : vector<1x2x18xf32> to vector<2x18xf32>
    %cst_185 = arith.constant dense<0.000000e+00> : vector<2x64xf32>
    %184 = tpu.matmul %183, %131, %cst_185 {dimension_numbers = #tpu.dot_dimension_numbers<[1], [0], [0], [1], [0, 0, 1, 1], [], []>} : vector<2x18xf32>, vector<18x64xf32>, vector<2x64xf32> -> vector<2x64xf32>
    %c7_186 = arith.constant 7 : index
    %c0_187 = arith.constant 0 : index
    %c0_188 = arith.constant 0 : index
    %185 = vector.load %arg7[%c7_186, %c0_187, %c0_188] : memref<9x64x64xf32, #tpu.memory_space<vmem>>, vector<1x64x64xf32>
    %186 = vector.shape_cast %185 : vector<1x64x64xf32> to vector<64x64xf32>
    %cst_189 = arith.constant dense<0.000000e+00> : vector<2x64xf32>
    %187 = tpu.matmul %184, %186, %cst_189 {dimension_numbers = #tpu.dot_dimension_numbers<[1], [0], [0], [1], [0, 0, 1, 1], [], []>} : vector<2x64xf32>, vector<64x64xf32>, vector<2x64xf32> -> vector<2x64xf32>
    %188 = arith.addf %181, %187 : vector<2x64xf32>
    %c8_190 = arith.constant 8 : index
    %c0_191 = arith.constant 0 : index
    %c0_192 = arith.constant 0 : index
    %189 = vector.load %arg6[%c8_190, %c0_191, %c0_192] : memref<9x2x18xf32, #tpu.memory_space<vmem>>, vector<1x2x18xf32>
    %190 = vector.shape_cast %189 : vector<1x2x18xf32> to vector<2x18xf32>
    %cst_193 = arith.constant dense<0.000000e+00> : vector<2x64xf32>
    %191 = tpu.matmul %190, %131, %cst_193 {dimension_numbers = #tpu.dot_dimension_numbers<[1], [0], [0], [1], [0, 0, 1, 1], [], []>} : vector<2x18xf32>, vector<18x64xf32>, vector<2x64xf32> -> vector<2x64xf32>
    %c8_194 = arith.constant 8 : index
    %c0_195 = arith.constant 0 : index
    %c0_196 = arith.constant 0 : index
    %192 = vector.load %arg7[%c8_194, %c0_195, %c0_196] : memref<9x64x64xf32, #tpu.memory_space<vmem>>, vector<1x64x64xf32>
    %193 = vector.shape_cast %192 : vector<1x64x64xf32> to vector<64x64xf32>
    %cst_197 = arith.constant dense<0.000000e+00> : vector<2x64xf32>
    %194 = tpu.matmul %191, %193, %cst_197 {dimension_numbers = #tpu.dot_dimension_numbers<[1], [0], [0], [1], [0, 0, 1, 1], [], []>} : vector<2x64xf32>, vector<64x64xf32>, vector<2x64xf32> -> vector<2x64xf32>
    %195 = arith.addf %188, %194 : vector<2x64xf32>
    %c0_198 = arith.constant 0 : index
    %c0_199 = arith.constant 0 : index
    %196 = vector.load %arg8[%c0_198, %c0_199] : memref<1x64xf32, #tpu.memory_space<vmem>>, vector<1x64xf32>
    %197 = vector.broadcast %196 : vector<1x64xf32> to vector<2x64xf32>
    %198 = arith.addf %195, %197 : vector<2x64xf32>
    %cst_200 = arith.constant 0.000000e+00 : f32
    %199 = vector.broadcast %cst_200 : f32 to vector<2x64xf32>
    %200 = arith.cmpf oge, %198, %199 : vector<2x64xf32>
    %cst_201 = arith.constant 0.00999999977 : f32
    %201 = vector.broadcast %cst_201 : f32 to vector<2x64xf32>
    %202 = arith.mulf %198, %201 : vector<2x64xf32>
    %203 = arith.select %200, %198, %202 : vector<2x64xi1>, vector<2x64xf32>
    %cst_202 = arith.constant 0.000000e+00 : f32
    %204 = vector.broadcast %cst_202 : f32 to vector<2x32xf32>
    %c0_203 = arith.constant 0 : index
    %c0_204 = arith.constant 0 : index
    %c0_205 = arith.constant 0 : index
    %205 = vector.load %arg9[%c0_203, %c0_204, %c0_205] : memref<1x2x2xf32, #tpu.memory_space<vmem>>, vector<1x2x2xf32>
    %206 = vector.shape_cast %205 : vector<1x2x2xf32> to vector<2x2xf32>
    %cst_206 = arith.constant dense<0.000000e+00> : vector<2x64xf32>
    %207 = tpu.matmul %206, %203, %cst_206 {dimension_numbers = #tpu.dot_dimension_numbers<[1], [0], [0], [1], [0, 0, 1, 1], [], []>} : vector<2x2xf32>, vector<2x64xf32>, vector<2x64xf32> -> vector<2x64xf32>
    %c0_207 = arith.constant 0 : index
    %c0_208 = arith.constant 0 : index
    %c0_209 = arith.constant 0 : index
    %208 = vector.load %arg10[%c0_207, %c0_208, %c0_209] : memref<1x64x32xf32, #tpu.memory_space<vmem>>, vector<1x64x32xf32>
    %209 = vector.shape_cast %208 : vector<1x64x32xf32> to vector<64x32xf32>
    %cst_210 = arith.constant dense<0.000000e+00> : vector<2x32xf32>
    %210 = tpu.matmul %207, %209, %cst_210 {dimension_numbers = #tpu.dot_dimension_numbers<[1], [0], [0], [1], [0, 0, 1, 1], [], []>} : vector<2x64xf32>, vector<64x32xf32>, vector<2x32xf32> -> vector<2x32xf32>
    %211 = arith.addf %204, %210 : vector<2x32xf32>
    %c0_211 = arith.constant 0 : index
    %c0_212 = arith.constant 0 : index
    %212 = vector.load %arg11[%c0_211, %c0_212] : memref<1x32xf32, #tpu.memory_space<vmem>>, vector<1x32xf32>
    %213 = vector.broadcast %212 : vector<1x32xf32> to vector<2x32xf32>
    %214 = arith.addf %211, %213 : vector<2x32xf32>
    %c0_213 = arith.constant 0 : index
    %c0_214 = arith.constant 0 : index
    %215 = vector.load %arg12[%c0_213, %c0_214] : memref<2x32xf32, #tpu.memory_space<vmem>>, vector<2x32xf32>
    tpu.vector_store %arg12[%c0_213, %c0_214], %214 {strides = array<i32>} : memref<2x32xf32, #tpu.memory_space<vmem>>, vector<2x32xf32>,
    return
  }
}

</mosaic_0001>

<llo_original>
// kernel: forward.1
$region0: #{forward.1}
  #allocation0 [shape = 'u32[]', space=smem, size = 0x4, offset = 0x4, fixed_abs, tag = 'smem constant byte address 0x4 - core index']
  #allocation1 [shape = 'u32[72,128]{1,0:T(1,128)}', space=vmem, size = 0x9000, scoped, tag = 'internal scratch']
  %s0 = inlined_call_operand.vmem [shape: f32[128,256], index: 0, kind: input, shape index: {}]
  %s1 = inlined_call_operand.vmem [shape: f32[256,32], index: 1, kind: input, shape index: {}]
  %s2 = inlined_call_operand.vmem [shape: f32[1,32], index: 2, kind: input, shape index: {}]
  %s3 = inlined_call_operand.vmem [shape: f32[16,18,128], index: 3, kind: input, shape index: {}]
  %s4 = inlined_call_operand.vmem [shape: f32[16,32,64], index: 4, kind: input, shape index: {}]
  %s5 = inlined_call_operand.vmem [shape: f32[1,64], index: 5, kind: input, shape index: {}]
  %s6 = inlined_call_operand.vmem [shape: f32[9,2,18], index: 6, kind: input, shape index: {}]
  %s7 = inlined_call_operand.vmem [shape: f32[9,64,64], index: 7, kind: input, shape index: {}]
  %s8 = inlined_call_operand.vmem [shape: f32[1,64], index: 8, kind: input, shape index: {}]
  %s9 = inlined_call_operand.vmem [shape: f32[1,2,2], index: 9, kind: input, shape index: {}]
  %s10 = inlined_call_operand.vmem [shape: f32[1,64,32], index: 10, kind: input, shape index: {}]
  %s11 = inlined_call_operand.vmem [shape: f32[1,32], index: 11, kind: input, shape index: {}]
  %s12 = inlined_call_operand.hbm [shape: f32[2,32], index: 12, kind: output, shape index: {}]
  %s13 = sld [smem:[#allocation0]]
  $region58: #{forward.1} parent=0
    _
  %s15 = ssub.s32 1, %s13
  %s16 = scalar_select 0, %s15, %s13
  $region1: #{forward.1} parent=0
    #allocation2 [shape = 'u8[1024]{0}', space=vmem, size = 0x400, scoped, tag = 'output window, operand 0, single buffered']
    #allocation3 [shape = 's32[1]{0}', space=sflag, size = 0x4, scoped, tag = 'scoped memory for forward.1']
    %17 = vsyncpa [#allocation3], 0
    // Predicated region
    $region2: #{forward.1} parent=1 // pred_check
      _
    $region3: #{forward.1} parent=1 // pred_check_branch
      %19 = sbr.rel (0) target = $region5
    $region4: #{forward.1} parent=1 // pred_region
      _
    $region5: #{forward.1} parent=1 // pred_fallthru
      _
    // Predicated region
    $region6: #{forward.1} parent=1 // pred_check
      _
    $region7: #{forward.1} parent=1 // pred_check_branch
      %21 = sbr.rel (0) target = $region9
    $region8: #{forward.1} parent=1 // pred_region
      _
    $region9: #{forward.1} parent=1 // pred_fallthru
      _
    // Predicated region
    $region10: #{forward.1} parent=1 // pred_check
      _
    $region11: #{forward.1} parent=1 // pred_check_branch
      %23 = sbr.rel (0) target = $region13
    $region12: #{forward.1} parent=1 // pred_region
      _
    $region13: #{forward.1} parent=1 // pred_fallthru
      _
    // Predicated region
    $region14: #{forward.1} parent=1 // pred_check
      _
    $region15: #{forward.1} parent=1 // pred_check_branch
      %25 = sbr.rel (0) target = $region17
    $region16: #{forward.1} parent=1 // pred_region
      _
    $region17: #{forward.1} parent=1 // pred_fallthru
      _
    // Predicated region
    $region18: #{forward.1} parent=1 // pred_check
      _
    $region19: #{forward.1} parent=1 // pred_check_branch
      %27 = sbr.rel (0) target = $region21
    $region20: #{forward.1} parent=1 // pred_region
      _
    $region21: #{forward.1} parent=1 // pred_fallthru
      _
    // Predicated region
    $region22: #{forward.1} parent=1 // pred_check
      _
    $region23: #{forward.1} parent=1 // pred_check_branch
      %29 = sbr.rel (0) target = $region25
    $region24: #{forward.1} parent=1 // pred_region
      _
    $region25: #{forward.1} parent=1 // pred_fallthru
      _
    // Predicated region
    $region26: #{forward.1} parent=1 // pred_check
      _
    $region27: #{forward.1} parent=1 // pred_check_branch
      %31 = sbr.rel (0) target = $region29
    $region28: #{forward.1} parent=1 // pred_region
      _
    $region29: #{forward.1} parent=1 // pred_fallthru
      _
    // Predicated region
    $region30: #{forward.1} parent=1 // pred_check
      _
    $region31: #{forward.1} parent=1 // pred_check_branch
      %33 = sbr.rel (0) target = $region33
    $region32: #{forward.1} parent=1 // pred_region
      _
    $region33: #{forward.1} parent=1 // pred_fallthru
      _
    // Predicated region
    $region34: #{forward.1} parent=1 // pred_check
      _
    $region35: #{forward.1} parent=1 // pred_check_branch
      %35 = sbr.rel (0) target = $region37
    $region36: #{forward.1} parent=1 // pred_region
      _
    $region37: #{forward.1} parent=1 // pred_fallthru
      _
    // Predicated region
    $region38: #{forward.1} parent=1 // pred_check
      _
    $region39: #{forward.1} parent=1 // pred_check_branch
      %37 = sbr.rel (0) target = $region41
    $region40: #{forward.1} parent=1 // pred_region
      _
    $region41: #{forward.1} parent=1 // pred_fallthru
      _
    // Predicated region
    $region42: #{forward.1} parent=1 // pred_check
      _
    $region43: #{forward.1} parent=1 // pred_check_branch
      %39 = sbr.rel (0) target = $region45
    $region44: #{forward.1} parent=1 // pred_region
      _
    $region45: #{forward.1} parent=1 // pred_fallthru
      _
    // Predicated region
    $region46: #{forward.1} parent=1 // pred_check
      _
    $region47: #{forward.1} parent=1 // pred_check_branch
      %41 = sbr.rel (0) target = $region49
    $region48: #{forward.1} parent=1 // pred_region
      _
    $region49: #{forward.1} parent=1 // pred_fallthru
      _
    %v42 = vld [vmem:[%s0] sm:$0xff]
    %v43 = vld [vmem:[%s0 + $0x8] sm:$0xff]
    %v44 = vld [vmem:[%s0 + $0x10] sm:$0xff]
    %v45 = vld [vmem:[%s0 + $0x18] sm:$0xff]
    %v46 = vld [vmem:[%s0 + $0x20] sm:$0xff]
    %v47 = vld [vmem:[%s0 + $0x28] sm:$0xff]
    %v48 = vld [vmem:[%s0 + $0x30] sm:$0xff]
    %v49 = vld [vmem:[%s0 + $0x38] sm:$0xff]
    %v50 = vld [vmem:[%s0 + $0x40] sm:$0xff]
    %v51 = vld [vmem:[%s0 + $0x48] sm:$0xff]
    %v52 = vld [vmem:[%s0 + $0x50] sm:$0xff]
    %v53 = vld [vmem:[%s0 + $0x58] sm:$0xff]
    %v54 = vld [vmem:[%s0 + $0x60] sm:$0xff]
    %v55 = vld [vmem:[%s0 + $0x68] sm:$0xff]
    %v56 = vld [vmem:[%s0 + $0x70] sm:$0xff]
    %v57 = vld [vmem:[%s0 + $0x78] sm:$0xff]
    %v58 = vld [vmem:[%s0 + $0x80] sm:$0xff]
    %v59 = vld [vmem:[%s0 + $0x88] sm:$0xff]
    %v60 = vld [vmem:[%s0 + $0x90] sm:$0xff]
    %v61 = vld [vmem:[%s0 + $0x98] sm:$0xff]
    %v62 = vld [vmem:[%s0 + $0xa0] sm:$0xff]
    %v63 = vld [vmem:[%s0 + $0xa8] sm:$0xff]
    %v64 = vld [vmem:[%s0 + $0xb0] sm:$0xff]
    %v65 = vld [vmem:[%s0 + $0xb8] sm:$0xff]
    %v66 = vld [vmem:[%s0 + $0xc0] sm:$0xff]
    %v67 = vld [vmem:[%s0 + $0xc8] sm:$0xff]
    %v68 = vld [vmem:[%s0 + $0xd0] sm:$0xff]
    %v69 = vld [vmem:[%s0 + $0xd8] sm:$0xff]
    %v70 = vld [vmem:[%s0 + $0xe0] sm:$0xff]
    %v71 = vld [vmem:[%s0 + $0xe8] sm:$0xff]
    %v72 = vld [vmem:[%s0 + $0xf0] sm:$0xff]
    %v73 = vld [vmem:[%s0 + $0xf8] sm:$0xff]
    %v74 = vld [vmem:[%s1] sm:$0xff]
    %v75 = vld [vmem:[%s1 + $0x8] sm:$0xff]
    %v76 = vld [vmem:[%s1 + $0x10] sm:$0xff]
    %v77 = vld [vmem:[%s1 + $0x18] sm:$0xff]
    %v78 = vld [vmem:[%s1 + $0x20] sm:$0xff]
    %v79 = vld [vmem:[%s1 + $0x28] sm:$0xff]
    %v80 = vld [vmem:[%s1 + $0x30] sm:$0xff]
    %v81 = vld [vmem:[%s1 + $0x38] sm:$0xff]
    %v82 = vld [vmem:[%s1 + $0x40] sm:$0xff]
    %v83 = vld [vmem:[%s1 + $0x48] sm:$0xff]
    %v84 = vld [vmem:[%s1 + $0x50] sm:$0xff]
    %v85 = vld [vmem:[%s1 + $0x58] sm:$0xff]
    %v86 = vld [vmem:[%s1 + $0x60] sm:$0xff]
    %v87 = vld [vmem:[%s1 + $0x68] sm:$0xff]
    %v88 = vld [vmem:[%s1 + $0x70] sm:$0xff]
    %v89 = vld [vmem:[%s1 + $0x78] sm:$0xff]
    %v90 = vld [vmem:[%s1 + $0x80] sm:$0xff]
    %v91 = vld [vmem:[%s1 + $0x88] sm:$0xff]
    %v92 = vld [vmem:[%s1 + $0x90] sm:$0xff]
    %v93 = vld [vmem:[%s1 + $0x98] sm:$0xff]
    %v94 = vld [vmem:[%s1 + $0xa0] sm:$0xff]
    %v95 = vld [vmem:[%s1 + $0xa8] sm:$0xff]
    %v96 = vld [vmem:[%s1 + $0xb0] sm:$0xff]
    %v97 = vld [vmem:[%s1 + $0xb8] sm:$0xff]
    %v98 = vld [vmem:[%s1 + $0xc0] sm:$0xff]
    %v99 = vld [vmem:[%s1 + $0xc8] sm:$0xff]
    %v100 = vld [vmem:[%s1 + $0xd0] sm:$0xff]
    %v101 = vld [vmem:[%s1 + $0xd8] sm:$0xff]
    %v102 = vld [vmem:[%s1 + $0xe0] sm:$0xff]
    %v103 = vld [vmem:[%s1 + $0xe8] sm:$0xff]
    %v104 = vld [vmem:[%s1 + $0xf0] sm:$0xff]
    %v105 = vld [vmem:[%s1 + $0xf8] sm:$0xff]
    %v106 = vld [vmem:[%s2] sm:$0x1]
    %v108 = vperm.slane %v106, 0
    %110 = vmatpush.msra.mxu0 %v89
    %111 = vmatpush.msra.mxu0 %v88
    %112 = vmatpush.msra.mxu0 %v87
    %113 = vmatpush.msra.mxu0 %v86
    %114 = vmatpush.msra.mxu0 %v85
    %115 = vmatpush.msra.mxu0 %v84
    %116 = vmatpush.msra.mxu0 %v83
    %117 = vmatpush.msra.mxu0 %v82
    %118 = vmatpush.msra.mxu0 %v81
    %119 = vmatpush.msra.mxu0 %v80
    %120 = vmatpush.msra.mxu0 %v79
    %121 = vmatpush.msra.mxu0 %v78
    %122 = vmatpush.msra.mxu0 %v77
    %123 = vmatpush.msra.mxu0 %v76
    %124 = vmatpush.msra.mxu0 %v75
    %125 = vmatpush.msra.mxu0 %v74
    %126 = vmatmul.f32.gmra.mxu0 %v42
    %v127 = vpop.f32.mrf.mxu0
    %v128 = vadd.f32 %v108, %v127
    %129 = vmatmul.f32.gmra.mxu0 %v44
    %v130 = vpop.f32.mrf.mxu0
    %v131 = vadd.f32 %v108, %v130
    %132 = vmatmul.f32.gmra.mxu0 %v46
    %v133 = vpop.f32.mrf.mxu0
    %v134 = vadd.f32 %v108, %v133
    %135 = vmatmul.f32.gmra.mxu0 %v48
    %v136 = vpop.f32.mrf.mxu0
    %v137 = vadd.f32 %v108, %v136
    %138 = vmatmul.f32.gmra.mxu0 %v50
    %v139 = vpop.f32.mrf.mxu0
    %v140 = vadd.f32 %v108, %v139
    %141 = vmatmul.f32.gmra.mxu0 %v52
    %v142 = vpop.f32.mrf.mxu0
    %v143 = vadd.f32 %v108, %v142
    %144 = vmatmul.f32.gmra.mxu0 %v54
    %v145 = vpop.f32.mrf.mxu0
    %v146 = vadd.f32 %v108, %v145
    %147 = vmatmul.f32.gmra.mxu0 %v56
    %v148 = vpop.f32.mrf.mxu0
    %v149 = vadd.f32 %v108, %v148
    %150 = vmatmul.f32.gmra.mxu0 %v58
    %v151 = vpop.f32.mrf.mxu0
    %v152 = vadd.f32 %v108, %v151
    %153 = vmatmul.f32.gmra.mxu0 %v60
    %v154 = vpop.f32.mrf.mxu0
    %v155 = vadd.f32 %v108, %v154
    %156 = vmatmul.f32.gmra.mxu0 %v62
    %v157 = vpop.f32.mrf.mxu0
    %v158 = vadd.f32 %v108, %v157
    %159 = vmatmul.f32.gmra.mxu0 %v64
    %v160 = vpop.f32.mrf.mxu0
    %v161 = vadd.f32 %v108, %v160
    %162 = vmatmul.f32.gmra.mxu0 %v66
    %v163 = vpop.f32.mrf.mxu0
    %v164 = vadd.f32 %v108, %v163
    %165 = vmatmul.f32.gmra.mxu0 %v68
    %v166 = vpop.f32.mrf.mxu0
    %v167 = vadd.f32 %v108, %v166
    %168 = vmatmul.f32.gmra.mxu0 %v70
    %v169 = vpop.f32.mrf.mxu0
    %v170 = vadd.f32 %v108, %v169
    %171 = vmatmul.f32.gmra.mxu0 %v72
    %v172 = vpop.f32.mrf.mxu0
    %v173 = vadd.f32 %v108, %v172
    %174 = vdwg.mxu0
    %175 = vmatpush.msra.mxu0 %v105
    %176 = vmatpush.msra.mxu0 %v104
    %177 = vmatpush.msra.mxu0 %v103
    %178 = vmatpush.msra.mxu0 %v102
    %179 = vmatpush.msra.mxu0 %v101
    %180 = vmatpush.msra.mxu0 %v100
    %181 = vmatpush.msra.mxu0 %v99
    %182 = vmatpush.msra.mxu0 %v98
    %183 = vmatpush.msra.mxu0 %v97
    %184 = vmatpush.msra.mxu0 %v96
    %185 = vmatpush.msra.mxu0 %v95
    %186 = vmatpush.msra.mxu0 %v94
    %187 = vmatpush.msra.mxu0 %v93
    %188 = vmatpush.msra.mxu0 %v92
    %189 = vmatpush.msra.mxu0 %v91
    %190 = vmatpush.msra.mxu0 %v90
    %191 = vmatmul.f32.gmra.mxu0 %v43
    %v192 = vpop.f32.mrf.mxu0
    %v193 = vadd.f32 %v128, %v192
    %194 = vmatmul.f32.gmra.mxu0 %v45
    %v195 = vpop.f32.mrf.mxu0
    %v196 = vadd.f32 %v131, %v195
    %197 = vmatmul.f32.gmra.mxu0 %v47
    %v198 = vpop.f32.mrf.mxu0
    %v199 = vadd.f32 %v134, %v198
    %200 = vmatmul.f32.gmra.mxu0 %v49
    %v201 = vpop.f32.mrf.mxu0
    %v202 = vadd.f32 %v137, %v201
    %203 = vmatmul.f32.gmra.mxu0 %v51
    %v204 = vpop.f32.mrf.mxu0
    %v205 = vadd.f32 %v140, %v204
    %206 = vmatmul.f32.gmra.mxu0 %v53
    %v207 = vpop.f32.mrf.mxu0
    %v208 = vadd.f32 %v143, %v207
    %209 = vmatmul.f32.gmra.mxu0 %v55
    %v210 = vpop.f32.mrf.mxu0
    %v211 = vadd.f32 %v146, %v210
    %212 = vmatmul.f32.gmra.mxu0 %v57
    %v213 = vpop.f32.mrf.mxu0
    %v214 = vadd.f32 %v149, %v213
    %215 = vmatmul.f32.gmra.mxu0 %v59
    %v216 = vpop.f32.mrf.mxu0
    %v217 = vadd.f32 %v152, %v216
    %218 = vmatmul.f32.gmra.mxu0 %v61
    %v219 = vpop.f32.mrf.mxu0
    %v220 = vadd.f32 %v155, %v219
    %221 = vmatmul.f32.gmra.mxu0 %v63
    %v222 = vpop.f32.mrf.mxu0
    %v223 = vadd.f32 %v158, %v222
    %224 = vmatmul.f32.gmra.mxu0 %v65
    %v225 = vpop.f32.mrf.mxu0
    %v226 = vadd.f32 %v161, %v225
    %227 = vmatmul.f32.gmra.mxu0 %v67
    %v228 = vpop.f32.mrf.mxu0
    %v229 = vadd.f32 %v164, %v228
    %230 = vmatmul.f32.gmra.mxu0 %v69
    %v231 = vpop.f32.mrf.mxu0
    %v232 = vadd.f32 %v167, %v231
    %233 = vmatmul.f32.gmra.mxu0 %v71
    %v234 = vpop.f32.mrf.mxu0
    %v235 = vadd.f32 %v170, %v234
    %236 = vmatmul.f32.gmra.mxu0 %v73
    %v237 = vpop.f32.mrf.mxu0
    %v238 = vadd.f32 %v173, %v237
    %239 = vdwg.mxu0
    %vm240 = vcmp.ge.f32.partialorder %v193, 0.0
    %vm241 = vcmp.ge.f32.partialorder %v196, 0.0
    %vm242 = vcmp.ge.f32.partialorder %v199, 0.0
    %vm243 = vcmp.ge.f32.partialorder %v202, 0.0
    %vm244 = vcmp.ge.f32.partialorder %v205, 0.0
    %vm245 = vcmp.ge.f32.partialorder %v208, 0.0
    %vm246 = vcmp.ge.f32.partialorder %v211, 0.0
    %vm247 = vcmp.ge.f32.partialorder %v214, 0.0
    %vm248 = vcmp.ge.f32.partialorder %v217, 0.0
    %vm249 = vcmp.ge.f32.partialorder %v220, 0.0
    %vm250 = vcmp.ge.f32.partialorder %v223, 0.0
    %vm251 = vcmp.ge.f32.partialorder %v226, 0.0
    %vm252 = vcmp.ge.f32.partialorder %v229, 0.0
    %vm253 = vcmp.ge.f32.partialorder %v232, 0.0
    %vm254 = vcmp.ge.f32.partialorder %v235, 0.0
    %vm255 = vcmp.ge.f32.partialorder %v238, 0.0
    %v256 = vmul.f32 %v193, 0.01
    %v257 = vmul.f32 %v196, 0.01
    %v258 = vmul.f32 %v199, 0.01
    %v259 = vmul.f32 %v202, 0.01
    %v260 = vmul.f32 %v205, 0.01
    %v261 = vmul.f32 %v208, 0.01
    %v262 = vmul.f32 %v211, 0.01
    %v263 = vmul.f32 %v214, 0.01
    %v264 = vmul.f32 %v217, 0.01
    %v265 = vmul.f32 %v220, 0.01
    %v266 = vmul.f32 %v223, 0.01
    %v267 = vmul.f32 %v226, 0.01
    %v268 = vmul.f32 %v229, 0.01
    %v269 = vmul.f32 %v232, 0.01
    %v270 = vmul.f32 %v235, 0.01
    %v271 = vmul.f32 %v238, 0.01
    %v272 = vsel %vm240, %v193, %v256
    %v273 = vsel %vm241, %v196, %v257
    %v274 = vsel %vm242, %v199, %v258
    %v275 = vsel %vm243, %v202, %v259
    %v276 = vsel %vm244, %v205, %v260
    %v277 = vsel %vm245, %v208, %v261
    %v278 = vsel %vm246, %v211, %v262
    %v279 = vsel %vm247, %v214, %v263
    %v280 = vsel %vm248, %v217, %v264
    %v281 = vsel %vm249, %v220, %v265
    %v282 = vsel %vm250, %v223, %v266
    %v283 = vsel %vm251, %v226, %v267
    %v284 = vsel %vm252, %v229, %v268
    %v285 = vsel %vm253, %v232, %v269
    %v286 = vsel %vm254, %v235, %v270
    %v287 = vsel %vm255, %v238, %v271
    %v288 = vld [vmem:[%s3] sm:$0xff]
    %v289 = vld [vmem:[%s3 + $0x8] sm:$0xff]
    %v290 = vld [vmem:[%s3 + $0x10] sm:$0x3]
    %291 = vmatpush.msra.mxu0 %v287
    %292 = vmatpush.msra.mxu0 %v286
    %293 = vmatpush.msra.mxu0 %v285
    %294 = vmatpush.msra.mxu0 %v284
    %295 = vmatpush.msra.mxu0 %v283
    %296 = vmatpush.msra.mxu0 %v282
    %297 = vmatpush.msra.mxu0 %v281
    %298 = vmatpush.msra.mxu0 %v280
    %299 = vmatpush.msra.mxu0 %v279
    %300 = vmatpush.msra.mxu0 %v278
    %301 = vmatpush.msra.mxu0 %v277
    %302 = vmatpush.msra.mxu0 %v276
    %303 = vmatpush.msra.mxu0 %v275
    %304 = vmatpush.msra.mxu0 %v274
    %305 = vmatpush.msra.mxu0 %v273
    %306 = vmatpush.msra.mxu0 %v272
    %307 = vmatmul.f32.gmra.mxu0 %v288
    %v308 = vpop.f32.mrf.mxu0
    %v309 = vadd.f32 0.0, %v308
    %310 = vmatmul.f32.gmra.mxu0 %v289
    %v311 = vpop.f32.mrf.mxu0
    %v312 = vadd.f32 0.0, %v311
    %313 = vmatmul.f32.gmra.mxu0 %v290
    %v314 = vpop.f32.mrf.mxu0
    %v315 = vadd.f32 0.0, %v314
    %316 = vdwg.mxu0
    %v317 = vld [vmem:[%s4] sm:$0xff]
    %v318 = vld [vmem:[%s4 + $0x8] sm:$0xff]
    %v319 = vld [vmem:[%s4 + $0x10] sm:$0xff]
    %v320 = vld [vmem:[%s4 + $0x18] sm:$0xff]
    %s321 = scalar_lea.vmem %s3, 24
    %v322 = vld [vmem:[%s321] sm:$0xff]
    %v323 = vld [vmem:[%s321 + $0x8] sm:$0xff]
    %v324 = vld [vmem:[%s321 + $0x10] sm:$0x3]
    %325 = vmatpush.msra.mxu0 %v287
    %326 = vmatpush.msra.mxu0 %v286
    %327 = vmatpush.msra.mxu0 %v285
    %328 = vmatpush.msra.mxu0 %v284
    %329 = vmatpush.msra.mxu0 %v283
    %330 = vmatpush.msra.mxu0 %v282
    %331 = vmatpush.msra.mxu0 %v281
    %332 = vmatpush.msra.mxu0 %v280
    %333 = vmatpush.msra.mxu0 %v279
    %334 = vmatpush.msra.mxu0 %v278
    %335 = vmatpush.msra.mxu0 %v277
    %336 = vmatpush.msra.mxu0 %v276
    %337 = vmatpush.msra.mxu0 %v275
    %338 = vmatpush.msra.mxu0 %v274
    %339 = vmatpush.msra.mxu0 %v273
    %340 = vmatpush.msra.mxu0 %v272
    %341 = vmatmul.f32.gmra.mxu0 %v322
    %v342 = vpop.f32.mrf.mxu0
    %v343 = vadd.f32 0.0, %v342
    %344 = vmatmul.f32.gmra.mxu0 %v323
    %v345 = vpop.f32.mrf.mxu0
    %v346 = vadd.f32 0.0, %v345
    %347 = vmatmul.f32.gmra.mxu0 %v324
    %v348 = vpop.f32.mrf.mxu0
    %v349 = vadd.f32 0.0, %v348
    %350 = vdwg.mxu0
    %s351 = scalar_lea.vmem %s4, 32
    %v352 = vld [vmem:[%s351] sm:$0xff]
    %v353 = vld [vmem:[%s351 + $0x8] sm:$0xff]
    %v354 = vld [vmem:[%s351 + $0x10] sm:$0xff]
    %v355 = vld [vmem:[%s351 + $0x18] sm:$0xff]
    %vm356 = vcmask 261120
    %v358 = vsel %vm356, %v343, 0
    %v361 = vsel %vm356, %v346, 0
    %v364 = vsel %vm356, %v349, 0
    %366 = vmatpush.msra.mxu0 0.0
    %367 = vmatpush.msra.mxu0 0.0
    %368 = vmatpush.msra.mxu0 0.0
    %369 = vmatpush.msra.mxu0 0.0
    %370 = vmatpush.msra.mxu0 0.0
    %371 = vmatpush.msra.mxu0 0.0
    %372 = vmatpush.msra.mxu0 0.0
    %373 = vmatpush.msra.mxu0 0.0
    %374 = vmatpush.msra.mxu0 0.0
    %375 = vmatpush.msra.mxu0 0.0
    %376 = vmatpush.msra.mxu0 0.0
    %377 = vmatpush.msra.mxu0 0.0
    %378 = vmatpush.msra.mxu0 %v355
    %379 = vmatpush.msra.mxu0 %v354
    %380 = vmatpush.msra.mxu0 %v353
    %381 = vmatpush.msra.mxu0 %v352
    %382 = vmatmul.f32.gmra.mxu0 %v358
    %v383 = vpop.f32.mrf.mxu0
    %v384 = vadd.f32 0.0, %v383
    %385 = vmatmul.f32.gmra.mxu0 %v361
    %v386 = vpop.f32.mrf.mxu0
    %v387 = vadd.f32 0.0, %v386
    %388 = vmatmul.f32.gmra.mxu0 %v364
    %v389 = vpop.f32.mrf.mxu0
    %v390 = vadd.f32 0.0, %v389
    %391 = vdwg.mxu0
    %v393 = vsel %vm356, %v309, 0
    %v396 = vsel %vm356, %v312, 0
    %v399 = vsel %vm356, %v315, 0
    %401 = vmatpush.msra.mxu0 0.0
    %402 = vmatpush.msra.mxu0 0.0
    %403 = vmatpush.msra.mxu0 0.0
    %404 = vmatpush.msra.mxu0 0.0
    %405 = vmatpush.msra.mxu0 0.0
    %406 = vmatpush.msra.mxu0 0.0
    %407 = vmatpush.msra.mxu0 0.0
    %408 = vmatpush.msra.mxu0 0.0
    %409 = vmatpush.msra.mxu0 0.0
    %410 = vmatpush.msra.mxu0 0.0
    %411 = vmatpush.msra.mxu0 0.0
    %412 = vmatpush.msra.mxu0 0.0
    %413 = vmatpush.msra.mxu0 %v320
    %414 = vmatpush.msra.mxu0 %v319
    %415 = vmatpush.msra.mxu0 %v318
    %416 = vmatpush.msra.mxu0 %v317
    %417 = vmatmul.f32.gmra.mxu0 %v393
    %v418 = vpop.f32.mrf.mxu0
    %v419 = vadd.f32 %v384, %v418
    %420 = vmatmul.f32.gmra.mxu0 %v396
    %v421 = vpop.f32.mrf.mxu0
    %v422 = vadd.f32 %v387, %v421
    %423 = vmatmul.f32.gmra.mxu0 %v399
    %v424 = vpop.f32.mrf.mxu0
    %v425 = vadd.f32 %v390, %v424
    %426 = vdwg.mxu0
    %s427 = scalar_lea.vmem %s3, 48
    %v428 = vld [vmem:[%s427] sm:$0xff]
    %v429 = vld [vmem:[%s427 + $0x8] sm:$0xff]
    %v430 = vld [vmem:[%s427 + $0x10] sm:$0x3]
    %431 = vmatpush.msra.mxu0 %v287
    %432 = vmatpush.msra.mxu0 %v286
    %433 = vmatpush.msra.mxu0 %v285
    %434 = vmatpush.msra.mxu0 %v284
    %435 = vmatpush.msra.mxu0 %v283
    %436 = vmatpush.msra.mxu0 %v282
    %437 = vmatpush.msra.mxu0 %v281
    %438 = vmatpush.msra.mxu0 %v280
    %439 = vmatpush.msra.mxu0 %v279
    %440 = vmatpush.msra.mxu0 %v278
    %441 = vmatpush.msra.mxu0 %v277
    %442 = vmatpush.msra.mxu0 %v276
    %443 = vmatpush.msra.mxu0 %v275
    %444 = vmatpush.msra.mxu0 %v274
    %445 = vmatpush.msra.mxu0 %v273
    %446 = vmatpush.msra.mxu0 %v272
    %447 = vmatmul.f32.gmra.mxu0 %v428
    %v448 = vpop.f32.mrf.mxu0
    %v449 = vadd.f32 0.0, %v448
    %450 = vmatmul.f32.gmra.mxu0 %v429
    %v451 = vpop.f32.mrf.mxu0
    %v452 = vadd.f32 0.0, %v451
    %453 = vmatmul.f32.gmra.mxu0 %v430
    %v454 = vpop.f32.mrf.mxu0
    %v455 = vadd.f32 0.0, %v454
    %456 = vdwg.mxu0
    %s457 = scalar_lea.vmem %s4, 64
    %v458 = vld [vmem:[%s457] sm:$0xff]
    %v459 = vld [vmem:[%s457 + $0x8] sm:$0xff]
    %v460 = vld [vmem:[%s457 + $0x10] sm:$0xff]
    %v461 = vld [vmem:[%s457 + $0x18] sm:$0xff]
    %v463 = vsel %vm356, %v449, 0
    %v466 = vsel %vm356, %v452, 0
    %v469 = vsel %vm356, %v455, 0
    %471 = vmatpush.msra.mxu0 0.0
    %472 = vmatpush.msra.mxu0 0.0
    %473 = vmatpush.msra.mxu0 0.0
    %474 = vmatpush.msra.mxu0 0.0
    %475 = vmatpush.msra.mxu0 0.0
    %476 = vmatpush.msra.mxu0 0.0
    %477 = vmatpush.msra.mxu0 0.0
    %478 = vmatpush.msra.mxu0 0.0
    %479 = vmatpush.msra.mxu0 0.0
    %480 = vmatpush.msra.mxu0 0.0
    %481 = vmatpush.msra.mxu0 0.0
    %482 = vmatpush.msra.mxu0 0.0
    %483 = vmatpush.msra.mxu0 %v461
    %484 = vmatpush.msra.mxu0 %v460
    %485 = vmatpush.msra.mxu0 %v459
    %486 = vmatpush.msra.mxu0 %v458
    %487 = vmatmul.f32.gmra.mxu0 %v463
    %v488 = vpop.f32.mrf.mxu0
    %v489 = vadd.f32 0.0, %v488
    %490 = vmatmul.f32.gmra.mxu0 %v466
    %v491 = vpop.f32.mrf.mxu0
    %v492 = vadd.f32 0.0, %v491
    %493 = vmatmul.f32.gmra.mxu0 %v469
    %v494 = vpop.f32.mrf.mxu0
    %v495 = vadd.f32 0.0, %v494
    %496 = vdwg.mxu0
    %v497 = vadd.f32 %v419, %v489
    %v498 = vadd.f32 %v422, %v492
    %v499 = vadd.f32 %v425, %v495
    %s500 = scalar_lea.vmem %s3, 72
    %v501 = vld [vmem:[%s500] sm:$0xff]
    %v502 = vld [vmem:[%s500 + $0x8] sm:$0xff]
    %v503 = vld [vmem:[%s500 + $0x10] sm:$0x3]
    %504 = vmatpush.msra.mxu0 %v287
    %505 = vmatpush.msra.mxu0 %v286
    %506 = vmatpush.msra.mxu0 %v285
    %507 = vmatpush.msra.mxu0 %v284
    %508 = vmatpush.msra.mxu0 %v283
    %509 = vmatpush.msra.mxu0 %v282
    %510 = vmatpush.msra.mxu0 %v281
    %511 = vmatpush.msra.mxu0 %v280
    %512 = vmatpush.msra.mxu0 %v279
    %513 = vmatpush.msra.mxu0 %v278
    %514 = vmatpush.msra.mxu0 %v277
    %515 = vmatpush.msra.mxu0 %v276
    %516 = vmatpush.msra.mxu0 %v275
    %517 = vmatpush.msra.mxu0 %v274
    %518 = vmatpush.msra.mxu0 %v273
    %519 = vmatpush.msra.mxu0 %v272
    %520 = vmatmul.f32.gmra.mxu0 %v501
    %v521 = vpop.f32.mrf.mxu0
    %v522 = vadd.f32 0.0, %v521
    %523 = vmatmul.f32.gmra.mxu0 %v502
    %v524 = vpop.f32.mrf.mxu0
    %v525 = vadd.f32 0.0, %v524
    %526 = vmatmul.f32.gmra.mxu0 %v503
    %v527 = vpop.f32.mrf.mxu0
    %v528 = vadd.f32 0.0, %v527
    %529 = vdwg.mxu0
    %s530 = scalar_lea.vmem %s4, 96
    %v531 = vld [vmem:[%s530] sm:$0xff]
    %v532 = vld [vmem:[%s530 + $0x8] sm:$0xff]
    %v533 = vld [vmem:[%s530 + $0x10] sm:$0xff]
    %v534 = vld [vmem:[%s530 + $0x18] sm:$0xff]
    %v536 = vsel %vm356, %v522, 0
    %v539 = vsel %vm356, %v525, 0
    %v542 = vsel %vm356, %v528, 0
    %544 = vmatpush.msra.mxu0 0.0
    %545 = vmatpush.msra.mxu0 0.0
    %546 = vmatpush.msra.mxu0 0.0
    %547 = vmatpush.msra.mxu0 0.0
    %548 = vmatpush.msra.mxu0 0.0
    %549 = vmatpush.msra.mxu0 0.0
    %550 = vmatpush.msra.mxu0 0.0
    %551 = vmatpush.msra.mxu0 0.0
    %552 = vmatpush.msra.mxu0 0.0
    %553 = vmatpush.msra.mxu0 0.0
    %554 = vmatpush.msra.mxu0 0.0
    %555 = vmatpush.msra.mxu0 0.0
    %556 = vmatpush.msra.mxu0 %v534
    %557 = vmatpush.msra.mxu0 %v533
    %558 = vmatpush.msra.mxu0 %v532
    %559 = vmatpush.msra.mxu0 %v531
    %560 = vmatmul.f32.gmra.mxu0 %v536
    %v561 = vpop.f32.mrf.mxu0
    %v562 = vadd.f32 0.0, %v561
    %563 = vmatmul.f32.gmra.mxu0 %v539
    %v564 = vpop.f32.mrf.mxu0
    %v565 = vadd.f32 0.0, %v564
    %566 = vmatmul.f32.gmra.mxu0 %v542
    %v567 = vpop.f32.mrf.mxu0
    %v568 = vadd.f32 0.0, %v567
    %569 = vdwg.mxu0
    %v570 = vadd.f32 %v497, %v562
    %v571 = vadd.f32 %v498, %v565
    %v572 = vadd.f32 %v499, %v568
    %s573 = scalar_lea.vmem %s3, 96
    %v574 = vld [vmem:[%s573] sm:$0xff]
    %v575 = vld [vmem:[%s573 + $0x8] sm:$0xff]
    %v576 = vld [vmem:[%s573 + $0x10] sm:$0x3]
    %577 = vmatpush.msra.mxu0 %v287
    %578 = vmatpush.msra.mxu0 %v286
    %579 = vmatpush.msra.mxu0 %v285
    %580 = vmatpush.msra.mxu0 %v284
    %581 = vmatpush.msra.mxu0 %v283
    %582 = vmatpush.msra.mxu0 %v282
    %583 = vmatpush.msra.mxu0 %v281
    %584 = vmatpush.msra.mxu0 %v280
    %585 = vmatpush.msra.mxu0 %v279
    %586 = vmatpush.msra.mxu0 %v278
    %587 = vmatpush.msra.mxu0 %v277
    %588 = vmatpush.msra.mxu0 %v276
    %589 = vmatpush.msra.mxu0 %v275
    %590 = vmatpush.msra.mxu0 %v274
    %591 = vmatpush.msra.mxu0 %v273
    %592 = vmatpush.msra.mxu0 %v272
    %593 = vmatmul.f32.gmra.mxu0 %v574
    %v594 = vpop.f32.mrf.mxu0
    %v595 = vadd.f32 0.0, %v594
    %596 = vmatmul.f32.gmra.mxu0 %v575
    %v597 = vpop.f32.mrf.mxu0
    %v598 = vadd.f32 0.0, %v597
    %599 = vmatmul.f32.gmra.mxu0 %v576
    %v600 = vpop.f32.mrf.mxu0
    %v601 = vadd.f32 0.0, %v600
    %602 = vdwg.mxu0
    %s603 = scalar_lea.vmem %s4, 128
    %v604 = vld [vmem:[%s603] sm:$0xff]
    %v605 = vld [vmem:[%s603 + $0x8] sm:$0xff]
    %v606 = vld [vmem:[%s603 + $0x10] sm:$0xff]
    %v607 = vld [vmem:[%s603 + $0x18] sm:$0xff]
    %v609 = vsel %vm356, %v595, 0
    %v612 = vsel %vm356, %v598, 0
    %v615 = vsel %vm356, %v601, 0
    %617 = vmatpush.msra.mxu0 0.0
    %618 = vmatpush.msra.mxu0 0.0
    %619 = vmatpush.msra.mxu0 0.0
    %620 = vmatpush.msra.mxu0 0.0
    %621 = vmatpush.msra.mxu0 0.0
    %622 = vmatpush.msra.mxu0 0.0
    %623 = vmatpush.msra.mxu0 0.0
    %624 = vmatpush.msra.mxu0 0.0
    %625 = vmatpush.msra.mxu0 0.0
    %626 = vmatpush.msra.mxu0 0.0
    %627 = vmatpush.msra.mxu0 0.0
    %628 = vmatpush.msra.mxu0 0.0
    %629 = vmatpush.msra.mxu0 %v607
    %630 = vmatpush.msra.mxu0 %v606
    %631 = vmatpush.msra.mxu0 %v605
    %632 = vmatpush.msra.mxu0 %v604
    %633 = vmatmul.f32.gmra.mxu0 %v609
    %v634 = vpop.f32.mrf.mxu0
    %v635 = vadd.f32 0.0, %v634
    %636 = vmatmul.f32.gmra.mxu0 %v612
    %v637 = vpop.f32.mrf.mxu0
    %v638 = vadd.f32 0.0, %v637
    %639 = vmatmul.f32.gmra.mxu0 %v615
    %v640 = vpop.f32.mrf.mxu0
    %v641 = vadd.f32 0.0, %v640
    %642 = vdwg.mxu0
    %v643 = vadd.f32 %v570, %v635
    %v644 = vadd.f32 %v571, %v638
    %v645 = vadd.f32 %v572, %v641
    %s646 = scalar_lea.vmem %s3, 120
    %v647 = vld [vmem:[%s646] sm:$0xff]
    %v648 = vld [vmem:[%s646 + $0x8] sm:$0xff]
    %v649 = vld [vmem:[%s646 + $0x10] sm:$0x3]
    %650 = vmatpush.msra.mxu0 %v287
    %651 = vmatpush.msra.mxu0 %v286
    %652 = vmatpush.msra.mxu0 %v285
    %653 = vmatpush.msra.mxu0 %v284
    %654 = vmatpush.msra.mxu0 %v283
    %655 = vmatpush.msra.mxu0 %v282
    %656 = vmatpush.msra.mxu0 %v281
    %657 = vmatpush.msra.mxu0 %v280
    %658 = vmatpush.msra.mxu0 %v279
    %659 = vmatpush.msra.mxu0 %v278
    %660 = vmatpush.msra.mxu0 %v277
    %661 = vmatpush.msra.mxu0 %v276
    %662 = vmatpush.msra.mxu0 %v275
    %663 = vmatpush.msra.mxu0 %v274
    %664 = vmatpush.msra.mxu0 %v273
    %665 = vmatpush.msra.mxu0 %v272
    %666 = vmatmul.f32.gmra.mxu0 %v647
    %v667 = vpop.f32.mrf.mxu0
    %v668 = vadd.f32 0.0, %v667
    %669 = vmatmul.f32.gmra.mxu0 %v648
    %v670 = vpop.f32.mrf.mxu0
    %v671 = vadd.f32 0.0, %v670
    %672 = vmatmul.f32.gmra.mxu0 %v649
    %v673 = vpop.f32.mrf.mxu0
    %v674 = vadd.f32 0.0, %v673
    %675 = vdwg.mxu0
    %s676 = scalar_lea.vmem %s4, 160
    %v677 = vld [vmem:[%s676] sm:$0xff]
    %v678 = vld [vmem:[%s676 + $0x8] sm:$0xff]
    %v679 = vld [vmem:[%s676 + $0x10] sm:$0xff]
    %v680 = vld [vmem:[%s676 + $0x18] sm:$0xff]
    %v682 = vsel %vm356, %v668, 0
    %v685 = vsel %vm356, %v671, 0
    %v688 = vsel %vm356, %v674, 0
    %690 = vmatpush.msra.mxu0 0.0
    %691 = vmatpush.msra.mxu0 0.0
    %692 = vmatpush.msra.mxu0 0.0
    %693 = vmatpush.msra.mxu0 0.0
    %694 = vmatpush.msra.mxu0 0.0
    %695 = vmatpush.msra.mxu0 0.0
    %696 = vmatpush.msra.mxu0 0.0
    %697 = vmatpush.msra.mxu0 0.0
    %698 = vmatpush.msra.mxu0 0.0
    %699 = vmatpush.msra.mxu0 0.0
    %700 = vmatpush.msra.mxu0 0.0
    %701 = vmatpush.msra.mxu0 0.0
    %702 = vmatpush.msra.mxu0 %v680
    %703 = vmatpush.msra.mxu0 %v679
    %704 = vmatpush.msra.mxu0 %v678
    %705 = vmatpush.msra.mxu0 %v677
    %706 = vmatmul.f32.gmra.mxu0 %v682
    %v707 = vpop.f32.mrf.mxu0
    %v708 = vadd.f32 0.0, %v707
    %709 = vmatmul.f32.gmra.mxu0 %v685
    %v710 = vpop.f32.mrf.mxu0
    %v711 = vadd.f32 0.0, %v710
    %712 = vmatmul.f32.gmra.mxu0 %v688
    %v713 = vpop.f32.mrf.mxu0
    %v714 = vadd.f32 0.0, %v713
    %715 = vdwg.mxu0
    %v716 = vadd.f32 %v643, %v708
    %v717 = vadd.f32 %v644, %v711
    %v718 = vadd.f32 %v645, %v714
    %s719 = scalar_lea.vmem %s3, 144
    %v720 = vld [vmem:[%s719] sm:$0xff]
    %v721 = vld [vmem:[%s719 + $0x8] sm:$0xff]
    %v722 = vld [vmem:[%s719 + $0x10] sm:$0x3]
    %723 = vmatpush.msra.mxu0 %v287
    %724 = vmatpush.msra.mxu0 %v286
    %725 = vmatpush.msra.mxu0 %v285
    %726 = vmatpush.msra.mxu0 %v284
    %727 = vmatpush.msra.mxu0 %v283
    %728 = vmatpush.msra.mxu0 %v282
    %729 = vmatpush.msra.mxu0 %v281
    %730 = vmatpush.msra.mxu0 %v280
    %731 = vmatpush.msra.mxu0 %v279
    %732 = vmatpush.msra.mxu0 %v278
    %733 = vmatpush.msra.mxu0 %v277
    %734 = vmatpush.msra.mxu0 %v276
    %735 = vmatpush.msra.mxu0 %v275
    %736 = vmatpush.msra.mxu0 %v274
    %737 = vmatpush.msra.mxu0 %v273
    %738 = vmatpush.msra.mxu0 %v272
    %739 = vmatmul.f32.gmra.mxu0 %v720
    %v740 = vpop.f32.mrf.mxu0
    %v741 = vadd.f32 0.0, %v740
    %742 = vmatmul.f32.gmra.mxu0 %v721
    %v743 = vpop.f32.mrf.mxu0
    %v744 = vadd.f32 0.0, %v743
    %745 = vmatmul.f32.gmra.mxu0 %v722
    %v746 = vpop.f32.mrf.mxu0
    %v747 = vadd.f32 0.0, %v746
    %748 = vdwg.mxu0
    %s749 = scalar_lea.vmem %s4, 192
    %v750 = vld [vmem:[%s749] sm:$0xff]
    %v751 = vld [vmem:[%s749 + $0x8] sm:$0xff]
    %v752 = vld [vmem:[%s749 + $0x10] sm:$0xff]
    %v753 = vld [vmem:[%s749 + $0x18] sm:$0xff]
    %v755 = vsel %vm356, %v741, 0
    %v758 = vsel %vm356, %v744, 0
    %v761 = vsel %vm356, %v747, 0
    %763 = vmatpush.msra.mxu0 0.0
    %764 = vmatpush.msra.mxu0 0.0
    %765 = vmatpush.msra.mxu0 0.0
    %766 = vmatpush.msra.mxu0 0.0
    %767 = vmatpush.msra.mxu0 0.0
    %768 = vmatpush.msra.mxu0 0.0
    %769 = vmatpush.msra.mxu0 0.0
    %770 = vmatpush.msra.mxu0 0.0
    %771 = vmatpush.msra.mxu0 0.0
    %772 = vmatpush.msra.mxu0 0.0
    %773 = vmatpush.msra.mxu0 0.0
    %774 = vmatpush.msra.mxu0 0.0
    %775 = vmatpush.msra.mxu0 %v753
    %776 = vmatpush.msra.mxu0 %v752
    %777 = vmatpush.msra.mxu0 %v751
    %778 = vmatpush.msra.mxu0 %v750
    %779 = vmatmul.f32.gmra.mxu0 %v755
    %v780 = vpop.f32.mrf.mxu0
    %v781 = vadd.f32 0.0, %v780
    %782 = vmatmul.f32.gmra.mxu0 %v758
    %v783 = vpop.f32.mrf.mxu0
    %v784 = vadd.f32 0.0, %v783
    %785 = vmatmul.f32.gmra.mxu0 %v761
    %v786 = vpop.f32.mrf.mxu0
    %v787 = vadd.f32 0.0, %v786
    %788 = vdwg.mxu0
    %v789 = vadd.f32 %v716, %v781
    %v790 = vadd.f32 %v717, %v784
    %v791 = vadd.f32 %v718, %v787
    %s792 = scalar_lea.vmem %s3, 168
    %v793 = vld [vmem:[%s792] sm:$0xff]
    %v794 = vld [vmem:[%s792 + $0x8] sm:$0xff]
    %v795 = vld [vmem:[%s792 + $0x10] sm:$0x3]
    %796 = vmatpush.msra.mxu0 %v287
    %797 = vmatpush.msra.mxu0 %v286
    %798 = vmatpush.msra.mxu0 %v285
    %799 = vmatpush.msra.mxu0 %v284
    %800 = vmatpush.msra.mxu0 %v283
    %801 = vmatpush.msra.mxu0 %v282
    %802 = vmatpush.msra.mxu0 %v281
    %803 = vmatpush.msra.mxu0 %v280
    %804 = vmatpush.msra.mxu0 %v279
    %805 = vmatpush.msra.mxu0 %v278
    %806 = vmatpush.msra.mxu0 %v277
    %807 = vmatpush.msra.mxu0 %v276
    %808 = vmatpush.msra.mxu0 %v275
    %809 = vmatpush.msra.mxu0 %v274
    %810 = vmatpush.msra.mxu0 %v273
    %811 = vmatpush.msra.mxu0 %v272
    %812 = vmatmul.f32.gmra.mxu0 %v793
    %v813 = vpop.f32.mrf.mxu0
    %v814 = vadd.f32 0.0, %v813
    %815 = vmatmul.f32.gmra.mxu0 %v794
    %v816 = vpop.f32.mrf.mxu0
    %v817 = vadd.f32 0.0, %v816
    %818 = vmatmul.f32.gmra.mxu0 %v795
    %v819 = vpop.f32.mrf.mxu0
    %v820 = vadd.f32 0.0, %v819
    %821 = vdwg.mxu0
    %s822 = scalar_lea.vmem %s4, 224
    %v823 = vld [vmem:[%s822] sm:$0xff]
    %v824 = vld [vmem:[%s822 + $0x8] sm:$0xff]
    %v825 = vld [vmem:[%s822 + $0x10] sm:$0xff]
    %v826 = vld [vmem:[%s822 + $0x18] sm:$0xff]
    %v828 = vsel %vm356, %v814, 0
    %v831 = vsel %vm356, %v817, 0
    %v834 = vsel %vm356, %v820, 0
    %836 = vmatpush.msra.mxu0 0.0
    %837 = vmatpush.msra.mxu0 0.0
    %838 = vmatpush.msra.mxu0 0.0
    %839 = vmatpush.msra.mxu0 0.0
    %840 = vmatpush.msra.mxu0 0.0
    %841 = vmatpush.msra.mxu0 0.0
    %842 = vmatpush.msra.mxu0 0.0
    %843 = vmatpush.msra.mxu0 0.0
    %844 = vmatpush.msra.mxu0 0.0
    %845 = vmatpush.msra.mxu0 0.0
    %846 = vmatpush.msra.mxu0 0.0
    %847 = vmatpush.msra.mxu0 0.0
    %848 = vmatpush.msra.mxu0 %v826
    %849 = vmatpush.msra.mxu0 %v825
    %850 = vmatpush.msra.mxu0 %v824
    %851 = vmatpush.msra.mxu0 %v823
    %852 = vmatmul.f32.gmra.mxu0 %v828
    %v853 = vpop.f32.mrf.mxu0
    %v854 = vadd.f32 0.0, %v853
    %855 = vmatmul.f32.gmra.mxu0 %v831
    %v856 = vpop.f32.mrf.mxu0
    %v857 = vadd.f32 0.0, %v856
    %858 = vmatmul.f32.gmra.mxu0 %v834
    %v859 = vpop.f32.mrf.mxu0
    %v860 = vadd.f32 0.0, %v859
    %861 = vdwg.mxu0
    %v862 = vadd.f32 %v789, %v854
    %v863 = vadd.f32 %v790, %v857
    %v864 = vadd.f32 %v791, %v860
    %s865 = scalar_lea.vmem %s3, 192
    %v866 = vld [vmem:[%s865] sm:$0xff]
    %v867 = vld [vmem:[%s865 + $0x8] sm:$0xff]
    %v868 = vld [vmem:[%s865 + $0x10] sm:$0x3]
    %869 = vmatpush.msra.mxu0 %v287
    %870 = vmatpush.msra.mxu0 %v286
    %871 = vmatpush.msra.mxu0 %v285
    %872 = vmatpush.msra.mxu0 %v284
    %873 = vmatpush.msra.mxu0 %v283
    %874 = vmatpush.msra.mxu0 %v282
    %875 = vmatpush.msra.mxu0 %v281
    %876 = vmatpush.msra.mxu0 %v280
    %877 = vmatpush.msra.mxu0 %v279
    %878 = vmatpush.msra.mxu0 %v278
    %879 = vmatpush.msra.mxu0 %v277
    %880 = vmatpush.msra.mxu0 %v276
    %881 = vmatpush.msra.mxu0 %v275
    %882 = vmatpush.msra.mxu0 %v274
    %883 = vmatpush.msra.mxu0 %v273
    %884 = vmatpush.msra.mxu0 %v272
    %885 = vmatmul.f32.gmra.mxu0 %v866
    %v886 = vpop.f32.mrf.mxu0
    %v887 = vadd.f32 0.0, %v886
    %888 = vmatmul.f32.gmra.mxu0 %v867
    %v889 = vpop.f32.mrf.mxu0
    %v890 = vadd.f32 0.0, %v889
    %891 = vmatmul.f32.gmra.mxu0 %v868
    %v892 = vpop.f32.mrf.mxu0
    %v893 = vadd.f32 0.0, %v892
    %894 = vdwg.mxu0
    %s895 = scalar_lea.vmem %s4, 256
    %v896 = vld [vmem:[%s895] sm:$0xff]
    %v897 = vld [vmem:[%s895 + $0x8] sm:$0xff]
    %v898 = vld [vmem:[%s895 + $0x10] sm:$0xff]
    %v899 = vld [vmem:[%s895 + $0x18] sm:$0xff]
    %v901 = vsel %vm356, %v887, 0
    %v904 = vsel %vm356, %v890, 0
    %v907 = vsel %vm356, %v893, 0
    %909 = vmatpush.msra.mxu0 0.0
    %910 = vmatpush.msra.mxu0 0.0
    %911 = vmatpush.msra.mxu0 0.0
    %912 = vmatpush.msra.mxu0 0.0
    %913 = vmatpush.msra.mxu0 0.0
    %914 = vmatpush.msra.mxu0 0.0
    %915 = vmatpush.msra.mxu0 0.0
    %916 = vmatpush.msra.mxu0 0.0
    %917 = vmatpush.msra.mxu0 0.0
    %918 = vmatpush.msra.mxu0 0.0
    %919 = vmatpush.msra.mxu0 0.0
    %920 = vmatpush.msra.mxu0 0.0
    %921 = vmatpush.msra.mxu0 %v899
    %922 = vmatpush.msra.mxu0 %v898
    %923 = vmatpush.msra.mxu0 %v897
    %924 = vmatpush.msra.mxu0 %v896
    %925 = vmatmul.f32.gmra.mxu0 %v901
    %v926 = vpop.f32.mrf.mxu0
    %v927 = vadd.f32 0.0, %v926
    %928 = vmatmul.f32.gmra.mxu0 %v904
    %v929 = vpop.f32.mrf.mxu0
    %v930 = vadd.f32 0.0, %v929
    %931 = vmatmul.f32.gmra.mxu0 %v907
    %v932 = vpop.f32.mrf.mxu0
    %v933 = vadd.f32 0.0, %v932
    %934 = vdwg.mxu0
    %v935 = vadd.f32 %v862, %v927
    %v936 = vadd.f32 %v863, %v930
    %v937 = vadd.f32 %v864, %v933
    %s938 = scalar_lea.vmem %s3, 216
    %v939 = vld [vmem:[%s938] sm:$0xff]
    %v940 = vld [vmem:[%s938 + $0x8] sm:$0xff]
    %v941 = vld [vmem:[%s938 + $0x10] sm:$0x3]
    %942 = vmatpush.msra.mxu0 %v287
    %943 = vmatpush.msra.mxu0 %v286
    %944 = vmatpush.msra.mxu0 %v285
    %945 = vmatpush.msra.mxu0 %v284
    %946 = vmatpush.msra.mxu0 %v283
    %947 = vmatpush.msra.mxu0 %v282
    %948 = vmatpush.msra.mxu0 %v281
    %949 = vmatpush.msra.mxu0 %v280
    %950 = vmatpush.msra.mxu0 %v279
    %951 = vmatpush.msra.mxu0 %v278
    %952 = vmatpush.msra.mxu0 %v277
    %953 = vmatpush.msra.mxu0 %v276
    %954 = vmatpush.msra.mxu0 %v275
    %955 = vmatpush.msra.mxu0 %v274
    %956 = vmatpush.msra.mxu0 %v273
    %957 = vmatpush.msra.mxu0 %v272
    %958 = vmatmul.f32.gmra.mxu0 %v939
    %v959 = vpop.f32.mrf.mxu0
    %v960 = vadd.f32 0.0, %v959
    %961 = vmatmul.f32.gmra.mxu0 %v940
    %v962 = vpop.f32.mrf.mxu0
    %v963 = vadd.f32 0.0, %v962
    %964 = vmatmul.f32.gmra.mxu0 %v941
    %v965 = vpop.f32.mrf.mxu0
    %v966 = vadd.f32 0.0, %v965
    %967 = vdwg.mxu0
    %s968 = scalar_lea.vmem %s4, 288
    %v969 = vld [vmem:[%s968] sm:$0xff]
    %v970 = vld [vmem:[%s968 + $0x8] sm:$0xff]
    %v971 = vld [vmem:[%s968 + $0x10] sm:$0xff]
    %v972 = vld [vmem:[%s968 + $0x18] sm:$0xff]
    %v974 = vsel %vm356, %v960, 0
    %v977 = vsel %vm356, %v963, 0
    %v980 = vsel %vm356, %v966, 0
    %982 = vmatpush.msra.mxu0 0.0
    %983 = vmatpush.msra.mxu0 0.0
    %984 = vmatpush.msra.mxu0 0.0
    %985 = vmatpush.msra.mxu0 0.0
    %986 = vmatpush.msra.mxu0 0.0
    %987 = vmatpush.msra.mxu0 0.0
    %988 = vmatpush.msra.mxu0 0.0
    %989 = vmatpush.msra.mxu0 0.0
    %990 = vmatpush.msra.mxu0 0.0
    %991 = vmatpush.msra.mxu0 0.0
    %992 = vmatpush.msra.mxu0 0.0
    %993 = vmatpush.msra.mxu0 0.0
    %994 = vmatpush.msra.mxu0 %v972
    %995 = vmatpush.msra.mxu0 %v971
    %996 = vmatpush.msra.mxu0 %v970
    %997 = vmatpush.msra.mxu0 %v969
    %998 = vmatmul.f32.gmra.mxu0 %v974
    %v999 = vpop.f32.mrf.mxu0
    %v1000 = vadd.f32 0.0, %v999
    %1001 = vmatmul.f32.gmra.mxu0 %v977
    %v1002 = vpop.f32.mrf.mxu0
    %v1003 = vadd.f32 0.0, %v1002
    %1004 = vmatmul.f32.gmra.mxu0 %v980
    %v1005 = vpop.f32.mrf.mxu0
    %v1006 = vadd.f32 0.0, %v1005
    %1007 = vdwg.mxu0
    %v1008 = vadd.f32 %v935, %v1000
    %v1009 = vadd.f32 %v936, %v1003
    %v1010 = vadd.f32 %v937, %v1006
    %s1011 = scalar_lea.vmem %s3, 240
    %v1012 = vld [vmem:[%s1011] sm:$0xff]
    %v1013 = vld [vmem:[%s1011 + $0x8] sm:$0xff]
    %v1014 = vld [vmem:[%s1011 + $0x10] sm:$0x3]
    %1015 = vmatpush.msra.mxu0 %v287
    %1016 = vmatpush.msra.mxu0 %v286
    %1017 = vmatpush.msra.mxu0 %v285
    %1018 = vmatpush.msra.mxu0 %v284
    %1019 = vmatpush.msra.mxu0 %v283
    %1020 = vmatpush.msra.mxu0 %v282
    %1021 = vmatpush.msra.mxu0 %v281
    %1022 = vmatpush.msra.mxu0 %v280
    %1023 = vmatpush.msra.mxu0 %v279
    %1024 = vmatpush.msra.mxu0 %v278
    %1025 = vmatpush.msra.mxu0 %v277
    %1026 = vmatpush.msra.mxu0 %v276
    %1027 = vmatpush.msra.mxu0 %v275
    %1028 = vmatpush.msra.mxu0 %v274
    %1029 = vmatpush.msra.mxu0 %v273
    %1030 = vmatpush.msra.mxu0 %v272
    %1031 = vmatmul.f32.gmra.mxu0 %v1012
    %v1032 = vpop.f32.mrf.mxu0
    %v1033 = vadd.f32 0.0, %v1032
    %1034 = vmatmul.f32.gmra.mxu0 %v1013
    %v1035 = vpop.f32.mrf.mxu0
    %v1036 = vadd.f32 0.0, %v1035
    %1037 = vmatmul.f32.gmra.mxu0 %v1014
    %v1038 = vpop.f32.mrf.mxu0
    %v1039 = vadd.f32 0.0, %v1038
    %1040 = vdwg.mxu0
    %s1041 = scalar_lea.vmem %s4, 320
    %v1042 = vld [vmem:[%s1041] sm:$0xff]
    %v1043 = vld [vmem:[%s1041 + $0x8] sm:$0xff]
    %v1044 = vld [vmem:[%s1041 + $0x10] sm:$0xff]
    %v1045 = vld [vmem:[%s1041 + $0x18] sm:$0xff]
    %v1047 = vsel %vm356, %v1033, 0
    %v1050 = vsel %vm356, %v1036, 0
    %v1053 = vsel %vm356, %v1039, 0
    %1055 = vmatpush.msra.mxu0 0.0
    %1056 = vmatpush.msra.mxu0 0.0
    %1057 = vmatpush.msra.mxu0 0.0
    %1058 = vmatpush.msra.mxu0 0.0
    %1059 = vmatpush.msra.mxu0 0.0
    %1060 = vmatpush.msra.mxu0 0.0
    %1061 = vmatpush.msra.mxu0 0.0
    %1062 = vmatpush.msra.mxu0 0.0
    %1063 = vmatpush.msra.mxu0 0.0
    %1064 = vmatpush.msra.mxu0 0.0
    %1065 = vmatpush.msra.mxu0 0.0
    %1066 = vmatpush.msra.mxu0 0.0
    %1067 = vmatpush.msra.mxu0 %v1045
    %1068 = vmatpush.msra.mxu0 %v1044
    %1069 = vmatpush.msra.mxu0 %v1043
    %1070 = vmatpush.msra.mxu0 %v1042
    %1071 = vmatmul.f32.gmra.mxu0 %v1047
    %v1072 = vpop.f32.mrf.mxu0
    %v1073 = vadd.f32 0.0, %v1072
    %1074 = vmatmul.f32.gmra.mxu0 %v1050
    %v1075 = vpop.f32.mrf.mxu0
    %v1076 = vadd.f32 0.0, %v1075
    %1077 = vmatmul.f32.gmra.mxu0 %v1053
    %v1078 = vpop.f32.mrf.mxu0
    %v1079 = vadd.f32 0.0, %v1078
    %1080 = vdwg.mxu0
    %v1081 = vadd.f32 %v1008, %v1073
    %v1082 = vadd.f32 %v1009, %v1076
    %v1083 = vadd.f32 %v1010, %v1079
    %s1084 = scalar_lea.vmem %s3, 264
    %v1085 = vld [vmem:[%s1084] sm:$0xff]
    %v1086 = vld [vmem:[%s1084 + $0x8] sm:$0xff]
    %v1087 = vld [vmem:[%s1084 + $0x10] sm:$0x3]
    %1088 = vmatpush.msra.mxu0 %v287
    %1089 = vmatpush.msra.mxu0 %v286
    %1090 = vmatpush.msra.mxu0 %v285
    %1091 = vmatpush.msra.mxu0 %v284
    %1092 = vmatpush.msra.mxu0 %v283
    %1093 = vmatpush.msra.mxu0 %v282
    %1094 = vmatpush.msra.mxu0 %v281
    %1095 = vmatpush.msra.mxu0 %v280
    %1096 = vmatpush.msra.mxu0 %v279
    %1097 = vmatpush.msra.mxu0 %v278
    %1098 = vmatpush.msra.mxu0 %v277
    %1099 = vmatpush.msra.mxu0 %v276
    %1100 = vmatpush.msra.mxu0 %v275
    %1101 = vmatpush.msra.mxu0 %v274
    %1102 = vmatpush.msra.mxu0 %v273
    %1103 = vmatpush.msra.mxu0 %v272
    %1104 = vmatmul.f32.gmra.mxu0 %v1085
    %v1105 = vpop.f32.mrf.mxu0
    %v1106 = vadd.f32 0.0, %v1105
    %1107 = vmatmul.f32.gmra.mxu0 %v1086
    %v1108 = vpop.f32.mrf.mxu0
    %v1109 = vadd.f32 0.0, %v1108
    %1110 = vmatmul.f32.gmra.mxu0 %v1087
    %v1111 = vpop.f32.mrf.mxu0
    %v1112 = vadd.f32 0.0, %v1111
    %1113 = vdwg.mxu0
    %s1114 = scalar_lea.vmem %s4, 352
    %v1115 = vld [vmem:[%s1114] sm:$0xff]
    %v1116 = vld [vmem:[%s1114 + $0x8] sm:$0xff]
    %v1117 = vld [vmem:[%s1114 + $0x10] sm:$0xff]
    %v1118 = vld [vmem:[%s1114 + $0x18] sm:$0xff]
    %v1120 = vsel %vm356, %v1106, 0
    %v1123 = vsel %vm356, %v1109, 0
    %v1126 = vsel %vm356, %v1112, 0
    %1128 = vmatpush.msra.mxu0 0.0
    %1129 = vmatpush.msra.mxu0 0.0
    %1130 = vmatpush.msra.mxu0 0.0
    %1131 = vmatpush.msra.mxu0 0.0
    %1132 = vmatpush.msra.mxu0 0.0
    %1133 = vmatpush.msra.mxu0 0.0
    %1134 = vmatpush.msra.mxu0 0.0
    %1135 = vmatpush.msra.mxu0 0.0
    %1136 = vmatpush.msra.mxu0 0.0
    %1137 = vmatpush.msra.mxu0 0.0
    %1138 = vmatpush.msra.mxu0 0.0
    %1139 = vmatpush.msra.mxu0 0.0
    %1140 = vmatpush.msra.mxu0 %v1118
    %1141 = vmatpush.msra.mxu0 %v1117
    %1142 = vmatpush.msra.mxu0 %v1116
    %1143 = vmatpush.msra.mxu0 %v1115
    %1144 = vmatmul.f32.gmra.mxu0 %v1120
    %v1145 = vpop.f32.mrf.mxu0
    %v1146 = vadd.f32 0.0, %v1145
    %1147 = vmatmul.f32.gmra.mxu0 %v1123
    %v1148 = vpop.f32.mrf.mxu0
    %v1149 = vadd.f32 0.0, %v1148
    %1150 = vmatmul.f32.gmra.mxu0 %v1126
    %v1151 = vpop.f32.mrf.mxu0
    %v1152 = vadd.f32 0.0, %v1151
    %1153 = vdwg.mxu0
    %v1154 = vadd.f32 %v1081, %v1146
    %v1155 = vadd.f32 %v1082, %v1149
    %v1156 = vadd.f32 %v1083, %v1152
    %s1157 = scalar_lea.vmem %s3, 288
    %v1158 = vld [vmem:[%s1157] sm:$0xff]
    %v1159 = vld [vmem:[%s1157 + $0x8] sm:$0xff]
    %v1160 = vld [vmem:[%s1157 + $0x10] sm:$0x3]
    %1161 = vmatpush.msra.mxu0 %v287
    %1162 = vmatpush.msra.mxu0 %v286
    %1163 = vmatpush.msra.mxu0 %v285
    %1164 = vmatpush.msra.mxu0 %v284
    %1165 = vmatpush.msra.mxu0 %v283
    %1166 = vmatpush.msra.mxu0 %v282
    %1167 = vmatpush.msra.mxu0 %v281
    %1168 = vmatpush.msra.mxu0 %v280
    %1169 = vmatpush.msra.mxu0 %v279
    %1170 = vmatpush.msra.mxu0 %v278
    %1171 = vmatpush.msra.mxu0 %v277
    %1172 = vmatpush.msra.mxu0 %v276
    %1173 = vmatpush.msra.mxu0 %v275
    %1174 = vmatpush.msra.mxu0 %v274
    %1175 = vmatpush.msra.mxu0 %v273
    %1176 = vmatpush.msra.mxu0 %v272
    %1177 = vmatmul.f32.gmra.mxu0 %v1158
    %v1178 = vpop.f32.mrf.mxu0
    %v1179 = vadd.f32 0.0, %v1178
    %1180 = vmatmul.f32.gmra.mxu0 %v1159
    %v1181 = vpop.f32.mrf.mxu0
    %v1182 = vadd.f32 0.0, %v1181
    %1183 = vmatmul.f32.gmra.mxu0 %v1160
    %v1184 = vpop.f32.mrf.mxu0
    %v1185 = vadd.f32 0.0, %v1184
    %1186 = vdwg.mxu0
    %s1187 = scalar_lea.vmem %s4, 384
    %v1188 = vld [vmem:[%s1187] sm:$0xff]
    %v1189 = vld [vmem:[%s1187 + $0x8] sm:$0xff]
    %v1190 = vld [vmem:[%s1187 + $0x10] sm:$0xff]
    %v1191 = vld [vmem:[%s1187 + $0x18] sm:$0xff]
    %v1193 = vsel %vm356, %v1179, 0
    %v1196 = vsel %vm356, %v1182, 0
    %v1199 = vsel %vm356, %v1185, 0
    %1201 = vmatpush.msra.mxu0 0.0
    %1202 = vmatpush.msra.mxu0 0.0
    %1203 = vmatpush.msra.mxu0 0.0
    %1204 = vmatpush.msra.mxu0 0.0
    %1205 = vmatpush.msra.mxu0 0.0
    %1206 = vmatpush.msra.mxu0 0.0
    %1207 = vmatpush.msra.mxu0 0.0
    %1208 = vmatpush.msra.mxu0 0.0
    %1209 = vmatpush.msra.mxu0 0.0
    %1210 = vmatpush.msra.mxu0 0.0
    %1211 = vmatpush.msra.mxu0 0.0
    %1212 = vmatpush.msra.mxu0 0.0
    %1213 = vmatpush.msra.mxu0 %v1191
    %1214 = vmatpush.msra.mxu0 %v1190
    %1215 = vmatpush.msra.mxu0 %v1189
    %1216 = vmatpush.msra.mxu0 %v1188
    %1217 = vmatmul.f32.gmra.mxu0 %v1193
    %v1218 = vpop.f32.mrf.mxu0
    %v1219 = vadd.f32 0.0, %v1218
    %1220 = vmatmul.f32.gmra.mxu0 %v1196
    %v1221 = vpop.f32.mrf.mxu0
    %v1222 = vadd.f32 0.0, %v1221
    %1223 = vmatmul.f32.gmra.mxu0 %v1199
    %v1224 = vpop.f32.mrf.mxu0
    %v1225 = vadd.f32 0.0, %v1224
    %1226 = vdwg.mxu0
    %v1227 = vadd.f32 %v1154, %v1219
    %v1228 = vadd.f32 %v1155, %v1222
    %v1229 = vadd.f32 %v1156, %v1225
    %s1230 = scalar_lea.vmem %s3, 312
    %v1231 = vld [vmem:[%s1230] sm:$0xff]
    %v1232 = vld [vmem:[%s1230 + $0x8] sm:$0xff]
    %v1233 = vld [vmem:[%s1230 + $0x10] sm:$0x3]
    %1234 = vmatpush.msra.mxu0 %v287
    %1235 = vmatpush.msra.mxu0 %v286
    %1236 = vmatpush.msra.mxu0 %v285
    %1237 = vmatpush.msra.mxu0 %v284
    %1238 = vmatpush.msra.mxu0 %v283
    %1239 = vmatpush.msra.mxu0 %v282
    %1240 = vmatpush.msra.mxu0 %v281
    %1241 = vmatpush.msra.mxu0 %v280
    %1242 = vmatpush.msra.mxu0 %v279
    %1243 = vmatpush.msra.mxu0 %v278
    %1244 = vmatpush.msra.mxu0 %v277
    %1245 = vmatpush.msra.mxu0 %v276
    %1246 = vmatpush.msra.mxu0 %v275
    %1247 = vmatpush.msra.mxu0 %v274
    %1248 = vmatpush.msra.mxu0 %v273
    %1249 = vmatpush.msra.mxu0 %v272
    %1250 = vmatmul.f32.gmra.mxu0 %v1231
    %v1251 = vpop.f32.mrf.mxu0
    %v1252 = vadd.f32 0.0, %v1251
    %1253 = vmatmul.f32.gmra.mxu0 %v1232
    %v1254 = vpop.f32.mrf.mxu0
    %v1255 = vadd.f32 0.0, %v1254
    %1256 = vmatmul.f32.gmra.mxu0 %v1233
    %v1257 = vpop.f32.mrf.mxu0
    %v1258 = vadd.f32 0.0, %v1257
    %1259 = vdwg.mxu0
    %s1260 = scalar_lea.vmem %s4, 416
    %v1261 = vld [vmem:[%s1260] sm:$0xff]
    %v1262 = vld [vmem:[%s1260 + $0x8] sm:$0xff]
    %v1263 = vld [vmem:[%s1260 + $0x10] sm:$0xff]
    %v1264 = vld [vmem:[%s1260 + $0x18] sm:$0xff]
    %v1266 = vsel %vm356, %v1252, 0
    %v1269 = vsel %vm356, %v1255, 0
    %v1272 = vsel %vm356, %v1258, 0
    %1274 = vmatpush.msra.mxu0 0.0
    %1275 = vmatpush.msra.mxu0 0.0
    %1276 = vmatpush.msra.mxu0 0.0
    %1277 = vmatpush.msra.mxu0 0.0
    %1278 = vmatpush.msra.mxu0 0.0
    %1279 = vmatpush.msra.mxu0 0.0
    %1280 = vmatpush.msra.mxu0 0.0
    %1281 = vmatpush.msra.mxu0 0.0
    %1282 = vmatpush.msra.mxu0 0.0
    %1283 = vmatpush.msra.mxu0 0.0
    %1284 = vmatpush.msra.mxu0 0.0
    %1285 = vmatpush.msra.mxu0 0.0
    %1286 = vmatpush.msra.mxu0 %v1264
    %1287 = vmatpush.msra.mxu0 %v1263
    %1288 = vmatpush.msra.mxu0 %v1262
    %1289 = vmatpush.msra.mxu0 %v1261
    %1290 = vmatmul.f32.gmra.mxu0 %v1266
    %v1291 = vpop.f32.mrf.mxu0
    %v1292 = vadd.f32 0.0, %v1291
    %1293 = vmatmul.f32.gmra.mxu0 %v1269
    %v1294 = vpop.f32.mrf.mxu0
    %v1295 = vadd.f32 0.0, %v1294
    %1296 = vmatmul.f32.gmra.mxu0 %v1272
    %v1297 = vpop.f32.mrf.mxu0
    %v1298 = vadd.f32 0.0, %v1297
    %1299 = vdwg.mxu0
    %v1300 = vadd.f32 %v1227, %v1292
    %v1301 = vadd.f32 %v1228, %v1295
    %v1302 = vadd.f32 %v1229, %v1298
    %s1303 = scalar_lea.vmem %s3, 336
    %v1304 = vld [vmem:[%s1303] sm:$0xff]
    %v1305 = vld [vmem:[%s1303 + $0x8] sm:$0xff]
    %v1306 = vld [vmem:[%s1303 + $0x10] sm:$0x3]
    %1307 = vmatpush.msra.mxu0 %v287
    %1308 = vmatpush.msra.mxu0 %v286
    %1309 = vmatpush.msra.mxu0 %v285
    %1310 = vmatpush.msra.mxu0 %v284
    %1311 = vmatpush.msra.mxu0 %v283
    %1312 = vmatpush.msra.mxu0 %v282
    %1313 = vmatpush.msra.mxu0 %v281
    %1314 = vmatpush.msra.mxu0 %v280
    %1315 = vmatpush.msra.mxu0 %v279
    %1316 = vmatpush.msra.mxu0 %v278
    %1317 = vmatpush.msra.mxu0 %v277
    %1318 = vmatpush.msra.mxu0 %v276
    %1319 = vmatpush.msra.mxu0 %v275
    %1320 = vmatpush.msra.mxu0 %v274
    %1321 = vmatpush.msra.mxu0 %v273
    %1322 = vmatpush.msra.mxu0 %v272
    %1323 = vmatmul.f32.gmra.mxu0 %v1304
    %v1324 = vpop.f32.mrf.mxu0
    %v1325 = vadd.f32 0.0, %v1324
    %1326 = vmatmul.f32.gmra.mxu0 %v1305
    %v1327 = vpop.f32.mrf.mxu0
    %v1328 = vadd.f32 0.0, %v1327
    %1329 = vmatmul.f32.gmra.mxu0 %v1306
    %v1330 = vpop.f32.mrf.mxu0
    %v1331 = vadd.f32 0.0, %v1330
    %1332 = vdwg.mxu0
    %s1333 = scalar_lea.vmem %s4, 448
    %v1334 = vld [vmem:[%s1333] sm:$0xff]
    %v1335 = vld [vmem:[%s1333 + $0x8] sm:$0xff]
    %v1336 = vld [vmem:[%s1333 + $0x10] sm:$0xff]
    %v1337 = vld [vmem:[%s1333 + $0x18] sm:$0xff]
    %v1339 = vsel %vm356, %v1325, 0
    %v1342 = vsel %vm356, %v1328, 0
    %v1345 = vsel %vm356, %v1331, 0
    %1347 = vmatpush.msra.mxu0 0.0
    %1348 = vmatpush.msra.mxu0 0.0
    %1349 = vmatpush.msra.mxu0 0.0
    %1350 = vmatpush.msra.mxu0 0.0
    %1351 = vmatpush.msra.mxu0 0.0
    %1352 = vmatpush.msra.mxu0 0.0
    %1353 = vmatpush.msra.mxu0 0.0
    %1354 = vmatpush.msra.mxu0 0.0
    %1355 = vmatpush.msra.mxu0 0.0
    %1356 = vmatpush.msra.mxu0 0.0
    %1357 = vmatpush.msra.mxu0 0.0
    %1358 = vmatpush.msra.mxu0 0.0
    %1359 = vmatpush.msra.mxu0 %v1337
    %1360 = vmatpush.msra.mxu0 %v1336
    %1361 = vmatpush.msra.mxu0 %v1335
    %1362 = vmatpush.msra.mxu0 %v1334
    %1363 = vmatmul.f32.gmra.mxu0 %v1339
    %v1364 = vpop.f32.mrf.mxu0
    %v1365 = vadd.f32 0.0, %v1364
    %1366 = vmatmul.f32.gmra.mxu0 %v1342
    %v1367 = vpop.f32.mrf.mxu0
    %v1368 = vadd.f32 0.0, %v1367
    %1369 = vmatmul.f32.gmra.mxu0 %v1345
    %v1370 = vpop.f32.mrf.mxu0
    %v1371 = vadd.f32 0.0, %v1370
    %1372 = vdwg.mxu0
    %v1373 = vadd.f32 %v1300, %v1365
    %v1374 = vadd.f32 %v1301, %v1368
    %v1375 = vadd.f32 %v1302, %v1371
    %s1376 = scalar_lea.vmem %s3, 360
    %v1377 = vld [vmem:[%s1376] sm:$0xff]
    %v1378 = vld [vmem:[%s1376 + $0x8] sm:$0xff]
    %v1379 = vld [vmem:[%s1376 + $0x10] sm:$0x3]
    %1380 = vmatpush.msra.mxu0 %v287
    %1381 = vmatpush.msra.mxu0 %v286
    %1382 = vmatpush.msra.mxu0 %v285
    %1383 = vmatpush.msra.mxu0 %v284
    %1384 = vmatpush.msra.mxu0 %v283
    %1385 = vmatpush.msra.mxu0 %v282
    %1386 = vmatpush.msra.mxu0 %v281
    %1387 = vmatpush.msra.mxu0 %v280
    %1388 = vmatpush.msra.mxu0 %v279
    %1389 = vmatpush.msra.mxu0 %v278
    %1390 = vmatpush.msra.mxu0 %v277
    %1391 = vmatpush.msra.mxu0 %v276
    %1392 = vmatpush.msra.mxu0 %v275
    %1393 = vmatpush.msra.mxu0 %v274
    %1394 = vmatpush.msra.mxu0 %v273
    %1395 = vmatpush.msra.mxu0 %v272
    %1396 = vmatmul.f32.gmra.mxu0 %v1377
    %v1397 = vpop.f32.mrf.mxu0
    %v1398 = vadd.f32 0.0, %v1397
    %1399 = vmatmul.f32.gmra.mxu0 %v1378
    %v1400 = vpop.f32.mrf.mxu0
    %v1401 = vadd.f32 0.0, %v1400
    %1402 = vmatmul.f32.gmra.mxu0 %v1379
    %v1403 = vpop.f32.mrf.mxu0
    %v1404 = vadd.f32 0.0, %v1403
    %1405 = vdwg.mxu0
    %s1406 = scalar_lea.vmem %s4, 480
    %v1407 = vld [vmem:[%s1406] sm:$0xff]
    %v1408 = vld [vmem:[%s1406 + $0x8] sm:$0xff]
    %v1409 = vld [vmem:[%s1406 + $0x10] sm:$0xff]
    %v1410 = vld [vmem:[%s1406 + $0x18] sm:$0xff]
    %v1412 = vsel %vm356, %v1398, 0
    %v1415 = vsel %vm356, %v1401, 0
    %v1418 = vsel %vm356, %v1404, 0
    %1420 = vmatpush.msra.mxu0 0.0
    %1421 = vmatpush.msra.mxu0 0.0
    %1422 = vmatpush.msra.mxu0 0.0
    %1423 = vmatpush.msra.mxu0 0.0
    %1424 = vmatpush.msra.mxu0 0.0
    %1425 = vmatpush.msra.mxu0 0.0
    %1426 = vmatpush.msra.mxu0 0.0
    %1427 = vmatpush.msra.mxu0 0.0
    %1428 = vmatpush.msra.mxu0 0.0
    %1429 = vmatpush.msra.mxu0 0.0
    %1430 = vmatpush.msra.mxu0 0.0
    %1431 = vmatpush.msra.mxu0 0.0
    %1432 = vmatpush.msra.mxu0 %v1410
    %1433 = vmatpush.msra.mxu0 %v1409
    %1434 = vmatpush.msra.mxu0 %v1408
    %1435 = vmatpush.msra.mxu0 %v1407
    %1436 = vmatmul.f32.gmra.mxu0 %v1412
    %v1437 = vpop.f32.mrf.mxu0
    %v1438 = vadd.f32 0.0, %v1437
    %1439 = vmatmul.f32.gmra.mxu0 %v1415
    %v1440 = vpop.f32.mrf.mxu0
    %v1441 = vadd.f32 0.0, %v1440
    %1442 = vmatmul.f32.gmra.mxu0 %v1418
    %v1443 = vpop.f32.mrf.mxu0
    %v1444 = vadd.f32 0.0, %v1443
    %1445 = vdwg.mxu0
    %v1446 = vadd.f32 %v1373, %v1438
    %v1447 = vadd.f32 %v1374, %v1441
    %v1448 = vadd.f32 %v1375, %v1444
    %v1449 = vld [vmem:[%s5] sm:$0x1]
    %v1451 = vperm.slane %v1449, 0
    %v1453 = vadd.f32 %v1446, %v1451
    %v1454 = vadd.f32 %v1447, %v1451
    %v1455 = vadd.f32 %v1448, %v1451
    %vm1456 = vcmp.ge.f32.partialorder %v1453, 0.0
    %vm1457 = vcmp.ge.f32.partialorder %v1454, 0.0
    %vm1458 = vcmp.ge.f32.partialorder %v1455, 0.0
    %v1459 = vmul.f32 %v1453, 0.01
    %v1460 = vmul.f32 %v1454, 0.01
    %v1461 = vmul.f32 %v1455, 0.01
    %v1462 = vsel %vm1456, %v1453, %v1459
    %v1463 = vsel %vm1457, %v1454, %v1460
    %v1464 = vsel %vm1458, %v1455, %v1461
    %v1465 = vld [vmem:[%s6] sm:$0x3]
    %vm1466 = vcmask 146432
    %v1468 = vsel %vm1466, %v1465, 0
    %vm1470 = vcmask 1041408
    %v1472 = vsel %vm1470, %v1464, 0
    %1474 = vmatpush.msra.mxu0 0.0
    %1475 = vmatpush.msra.mxu0 0.0
    %1476 = vmatpush.msra.mxu0 0.0
    %1477 = vmatpush.msra.mxu0 0.0
    %1478 = vmatpush.msra.mxu0 0.0
    %1479 = vmatpush.msra.mxu0 0.0
    %1480 = vmatpush.msra.mxu0 0.0
    %1481 = vmatpush.msra.mxu0 0.0
    %1482 = vmatpush.msra.mxu0 0.0
    %1483 = vmatpush.msra.mxu0 0.0
    %1484 = vmatpush.msra.mxu0 0.0
    %1485 = vmatpush.msra.mxu0 0.0
    %1486 = vmatpush.msra.mxu0 0.0
    %1487 = vmatpush.msra.mxu0 %v1472
    %1488 = vmatpush.msra.mxu0 %v1463
    %1489 = vmatpush.msra.mxu0 %v1462
    %1490 = vmatmul.f32.gmra.mxu0 %v1468
    %v1491 = vpop.f32.mrf.mxu0
    %v1492 = vadd.f32 0.0, %v1491
    %1493 = vdwg.mxu0
    %v1494 = vld [vmem:[%s7] sm:$0xff]
    %v1495 = vld [vmem:[%s7 + $0x8] sm:$0xff]
    %v1496 = vld [vmem:[%s7 + $0x10] sm:$0xff]
    %v1497 = vld [vmem:[%s7 + $0x18] sm:$0xff]
    %v1498 = vld [vmem:[%s7 + $0x20] sm:$0xff]
    %v1499 = vld [vmem:[%s7 + $0x28] sm:$0xff]
    %v1500 = vld [vmem:[%s7 + $0x30] sm:$0xff]
    %v1501 = vld [vmem:[%s7 + $0x38] sm:$0xff]
    %s1502 = scalar_lea.vmem %s6, 2
    %v1503 = vld [vmem:[%s1502] sm:$0x3]
    %v1505 = vsel %vm1466, %v1503, 0
    %1507 = vmatpush.msra.mxu0 0.0
    %1508 = vmatpush.msra.mxu0 0.0
    %1509 = vmatpush.msra.mxu0 0.0
    %1510 = vmatpush.msra.mxu0 0.0
    %1511 = vmatpush.msra.mxu0 0.0
    %1512 = vmatpush.msra.mxu0 0.0
    %1513 = vmatpush.msra.mxu0 0.0
    %1514 = vmatpush.msra.mxu0 0.0
    %1515 = vmatpush.msra.mxu0 0.0
    %1516 = vmatpush.msra.mxu0 0.0
    %1517 = vmatpush.msra.mxu0 0.0
    %1518 = vmatpush.msra.mxu0 0.0
    %1519 = vmatpush.msra.mxu0 0.0
    %1520 = vmatpush.msra.mxu0 %v1472
    %1521 = vmatpush.msra.mxu0 %v1463
    %1522 = vmatpush.msra.mxu0 %v1462
    %1523 = vmatmul.f32.gmra.mxu0 %v1505
    %v1524 = vpop.f32.mrf.mxu0
    %v1525 = vadd.f32 0.0, %v1524
    %1526 = vdwg.mxu0
    %s1527 = scalar_lea.vmem %s7, 64
    %v1528 = vld [vmem:[%s1527] sm:$0xff]
    %v1529 = vld [vmem:[%s1527 + $0x8] sm:$0xff]
    %v1530 = vld [vmem:[%s1527 + $0x10] sm:$0xff]
    %v1531 = vld [vmem:[%s1527 + $0x18] sm:$0xff]
    %v1532 = vld [vmem:[%s1527 + $0x20] sm:$0xff]
    %v1533 = vld [vmem:[%s1527 + $0x28] sm:$0xff]
    %v1534 = vld [vmem:[%s1527 + $0x30] sm:$0xff]
    %v1535 = vld [vmem:[%s1527 + $0x38] sm:$0xff]
    %vm1536 = vcmask 523264
    %v1538 = vsel %vm1536, %v1525, 0
    %1540 = vmatpush.msra.mxu0 0.0
    %1541 = vmatpush.msra.mxu0 0.0
    %1542 = vmatpush.msra.mxu0 0.0
    %1543 = vmatpush.msra.mxu0 0.0
    %1544 = vmatpush.msra.mxu0 0.0
    %1545 = vmatpush.msra.mxu0 0.0
    %1546 = vmatpush.msra.mxu0 0.0
    %1547 = vmatpush.msra.mxu0 0.0
    %1548 = vmatpush.msra.mxu0 %v1535
    %1549 = vmatpush.msra.mxu0 %v1534
    %1550 = vmatpush.msra.mxu0 %v1533
    %1551 = vmatpush.msra.mxu0 %v1532
    %1552 = vmatpush.msra.mxu0 %v1531
    %1553 = vmatpush.msra.mxu0 %v1530
    %1554 = vmatpush.msra.mxu0 %v1529
    %1555 = vmatpush.msra.mxu0 %v1528
    %1556 = vmatmul.f32.gmra.mxu0 %v1538
    %v1557 = vpop.f32.mrf.mxu0
    %v1558 = vadd.f32 0.0, %v1557
    %1559 = vdwg.mxu0
    %v1561 = vsel %vm1536, %v1492, 0
    %1563 = vmatpush.msra.mxu0 0.0
    %1564 = vmatpush.msra.mxu0 0.0
    %1565 = vmatpush.msra.mxu0 0.0
    %1566 = vmatpush.msra.mxu0 0.0
    %1567 = vmatpush.msra.mxu0 0.0
    %1568 = vmatpush.msra.mxu0 0.0
    %1569 = vmatpush.msra.mxu0 0.0
    %1570 = vmatpush.msra.mxu0 0.0
    %1571 = vmatpush.msra.mxu0 %v1501
    %1572 = vmatpush.msra.mxu0 %v1500
    %1573 = vmatpush.msra.mxu0 %v1499
    %1574 = vmatpush.msra.mxu0 %v1498
    %1575 = vmatpush.msra.mxu0 %v1497
    %1576 = vmatpush.msra.mxu0 %v1496
    %1577 = vmatpush.msra.mxu0 %v1495
    %1578 = vmatpush.msra.mxu0 %v1494
    %1579 = vmatmul.f32.gmra.mxu0 %v1561
    %v1580 = vpop.f32.mrf.mxu0
    %v1581 = vadd.f32 %v1558, %v1580
    %1582 = vdwg.mxu0
    %s1583 = scalar_lea.vmem %s6, 4
    %v1584 = vld [vmem:[%s1583] sm:$0x3]
    %v1586 = vsel %vm1466, %v1584, 0
    %1588 = vmatpush.msra.mxu0 0.0
    %1589 = vmatpush.msra.mxu0 0.0
    %1590 = vmatpush.msra.mxu0 0.0
    %1591 = vmatpush.msra.mxu0 0.0
    %1592 = vmatpush.msra.mxu0 0.0
    %1593 = vmatpush.msra.mxu0 0.0
    %1594 = vmatpush.msra.mxu0 0.0
    %1595 = vmatpush.msra.mxu0 0.0
    %1596 = vmatpush.msra.mxu0 0.0
    %1597 = vmatpush.msra.mxu0 0.0
    %1598 = vmatpush.msra.mxu0 0.0
    %1599 = vmatpush.msra.mxu0 0.0
    %1600 = vmatpush.msra.mxu0 0.0
    %1601 = vmatpush.msra.mxu0 %v1472
    %1602 = vmatpush.msra.mxu0 %v1463
    %1603 = vmatpush.msra.mxu0 %v1462
    %1604 = vmatmul.f32.gmra.mxu0 %v1586
    %v1605 = vpop.f32.mrf.mxu0
    %v1606 = vadd.f32 0.0, %v1605
    %1607 = vdwg.mxu0
    %s1608 = scalar_lea.vmem %s7, 128
    %v1609 = vld [vmem:[%s1608] sm:$0xff]
    %v1610 = vld [vmem:[%s1608 + $0x8] sm:$0xff]
    %v1611 = vld [vmem:[%s1608 + $0x10] sm:$0xff]
    %v1612 = vld [vmem:[%s1608 + $0x18] sm:$0xff]
    %v1613 = vld [vmem:[%s1608 + $0x20] sm:$0xff]
    %v1614 = vld [vmem:[%s1608 + $0x28] sm:$0xff]
    %v1615 = vld [vmem:[%s1608 + $0x30] sm:$0xff]
    %v1616 = vld [vmem:[%s1608 + $0x38] sm:$0xff]
    %v1618 = vsel %vm1536, %v1606, 0
    %1620 = vmatpush.msra.mxu0 0.0
    %1621 = vmatpush.msra.mxu0 0.0
    %1622 = vmatpush.msra.mxu0 0.0
    %1623 = vmatpush.msra.mxu0 0.0
    %1624 = vmatpush.msra.mxu0 0.0
    %1625 = vmatpush.msra.mxu0 0.0
    %1626 = vmatpush.msra.mxu0 0.0
    %1627 = vmatpush.msra.mxu0 0.0
    %1628 = vmatpush.msra.mxu0 %v1616
    %1629 = vmatpush.msra.mxu0 %v1615
    %1630 = vmatpush.msra.mxu0 %v1614
    %1631 = vmatpush.msra.mxu0 %v1613
    %1632 = vmatpush.msra.mxu0 %v1612
    %1633 = vmatpush.msra.mxu0 %v1611
    %1634 = vmatpush.msra.mxu0 %v1610
    %1635 = vmatpush.msra.mxu0 %v1609
    %1636 = vmatmul.f32.gmra.mxu0 %v1618
    %v1637 = vpop.f32.mrf.mxu0
    %v1638 = vadd.f32 0.0, %v1637
    %1639 = vdwg.mxu0
    %v1640 = vadd.f32 %v1581, %v1638
    %s1641 = scalar_lea.vmem %s6, 6
    %v1642 = vld [vmem:[%s1641] sm:$0x3]
    %v1644 = vsel %vm1466, %v1642, 0
    %1646 = vmatpush.msra.mxu0 0.0
    %1647 = vmatpush.msra.mxu0 0.0
    %1648 = vmatpush.msra.mxu0 0.0
    %1649 = vmatpush.msra.mxu0 0.0
    %1650 = vmatpush.msra.mxu0 0.0
    %1651 = vmatpush.msra.mxu0 0.0
    %1652 = vmatpush.msra.mxu0 0.0
    %1653 = vmatpush.msra.mxu0 0.0
    %1654 = vmatpush.msra.mxu0 0.0
    %1655 = vmatpush.msra.mxu0 0.0
    %1656 = vmatpush.msra.mxu0 0.0
    %1657 = vmatpush.msra.mxu0 0.0
    %1658 = vmatpush.msra.mxu0 0.0
    %1659 = vmatpush.msra.mxu0 %v1472
    %1660 = vmatpush.msra.mxu0 %v1463
    %1661 = vmatpush.msra.mxu0 %v1462
    %1662 = vmatmul.f32.gmra.mxu0 %v1644
    %v1663 = vpop.f32.mrf.mxu0
    %v1664 = vadd.f32 0.0, %v1663
    %1665 = vdwg.mxu0
    %s1666 = scalar_lea.vmem %s7, 192
    %v1667 = vld [vmem:[%s1666] sm:$0xff]
    %v1668 = vld [vmem:[%s1666 + $0x8] sm:$0xff]
    %v1669 = vld [vmem:[%s1666 + $0x10] sm:$0xff]
    %v1670 = vld [vmem:[%s1666 + $0x18] sm:$0xff]
    %v1671 = vld [vmem:[%s1666 + $0x20] sm:$0xff]
    %v1672 = vld [vmem:[%s1666 + $0x28] sm:$0xff]
    %v1673 = vld [vmem:[%s1666 + $0x30] sm:$0xff]
    %v1674 = vld [vmem:[%s1666 + $0x38] sm:$0xff]
    %v1676 = vsel %vm1536, %v1664, 0
    %1678 = vmatpush.msra.mxu0 0.0
    %1679 = vmatpush.msra.mxu0 0.0
    %1680 = vmatpush.msra.mxu0 0.0
    %1681 = vmatpush.msra.mxu0 0.0
    %1682 = vmatpush.msra.mxu0 0.0
    %1683 = vmatpush.msra.mxu0 0.0
    %1684 = vmatpush.msra.mxu0 0.0
    %1685 = vmatpush.msra.mxu0 0.0
    %1686 = vmatpush.msra.mxu0 %v1674
    %1687 = vmatpush.msra.mxu0 %v1673
    %1688 = vmatpush.msra.mxu0 %v1672
    %1689 = vmatpush.msra.mxu0 %v1671
    %1690 = vmatpush.msra.mxu0 %v1670
    %1691 = vmatpush.msra.mxu0 %v1669
    %1692 = vmatpush.msra.mxu0 %v1668
    %1693 = vmatpush.msra.mxu0 %v1667
    %1694 = vmatmul.f32.gmra.mxu0 %v1676
    %v1695 = vpop.f32.mrf.mxu0
    %v1696 = vadd.f32 0.0, %v1695
    %1697 = vdwg.mxu0
    %v1698 = vadd.f32 %v1640, %v1696
    %s1699 = scalar_lea.vmem %s6, 8
    %v1700 = vld [vmem:[%s1699] sm:$0x3]
    %v1702 = vsel %vm1466, %v1700, 0
    %1704 = vmatpush.msra.mxu0 0.0
    %1705 = vmatpush.msra.mxu0 0.0
    %1706 = vmatpush.msra.mxu0 0.0
    %1707 = vmatpush.msra.mxu0 0.0
    %1708 = vmatpush.msra.mxu0 0.0
    %1709 = vmatpush.msra.mxu0 0.0
    %1710 = vmatpush.msra.mxu0 0.0
    %1711 = vmatpush.msra.mxu0 0.0
    %1712 = vmatpush.msra.mxu0 0.0
    %1713 = vmatpush.msra.mxu0 0.0
    %1714 = vmatpush.msra.mxu0 0.0
    %1715 = vmatpush.msra.mxu0 0.0
    %1716 = vmatpush.msra.mxu0 0.0
    %1717 = vmatpush.msra.mxu0 %v1472
    %1718 = vmatpush.msra.mxu0 %v1463
    %1719 = vmatpush.msra.mxu0 %v1462
    %1720 = vmatmul.f32.gmra.mxu0 %v1702
    %v1721 = vpop.f32.mrf.mxu0
    %v1722 = vadd.f32 0.0, %v1721
    %1723 = vdwg.mxu0
    %s1724 = scalar_lea.vmem %s7, 256
    %v1725 = vld [vmem:[%s1724] sm:$0xff]
    %v1726 = vld [vmem:[%s1724 + $0x8] sm:$0xff]
    %v1727 = vld [vmem:[%s1724 + $0x10] sm:$0xff]
    %v1728 = vld [vmem:[%s1724 + $0x18] sm:$0xff]
    %v1729 = vld [vmem:[%s1724 + $0x20] sm:$0xff]
    %v1730 = vld [vmem:[%s1724 + $0x28] sm:$0xff]
    %v1731 = vld [vmem:[%s1724 + $0x30] sm:$0xff]
    %v1732 = vld [vmem:[%s1724 + $0x38] sm:$0xff]
    %v1734 = vsel %vm1536, %v1722, 0
    %1736 = vmatpush.msra.mxu0 0.0
    %1737 = vmatpush.msra.mxu0 0.0
    %1738 = vmatpush.msra.mxu0 0.0
    %1739 = vmatpush.msra.mxu0 0.0
    %1740 = vmatpush.msra.mxu0 0.0
    %1741 = vmatpush.msra.mxu0 0.0
    %1742 = vmatpush.msra.mxu0 0.0
    %1743 = vmatpush.msra.mxu0 0.0
    %1744 = vmatpush.msra.mxu0 %v1732
    %1745 = vmatpush.msra.mxu0 %v1731
    %1746 = vmatpush.msra.mxu0 %v1730
    %1747 = vmatpush.msra.mxu0 %v1729
    %1748 = vmatpush.msra.mxu0 %v1728
    %1749 = vmatpush.msra.mxu0 %v1727
    %1750 = vmatpush.msra.mxu0 %v1726
    %1751 = vmatpush.msra.mxu0 %v1725
    %1752 = vmatmul.f32.gmra.mxu0 %v1734
    %v1753 = vpop.f32.mrf.mxu0
    %v1754 = vadd.f32 0.0, %v1753
    %1755 = vdwg.mxu0
    %v1756 = vadd.f32 %v1698, %v1754
    %s1757 = scalar_lea.vmem %s6, 10
    %v1758 = vld [vmem:[%s1757] sm:$0x3]
    %v1760 = vsel %vm1466, %v1758, 0
    %1762 = vmatpush.msra.mxu0 0.0
    %1763 = vmatpush.msra.mxu0 0.0
    %1764 = vmatpush.msra.mxu0 0.0
    %1765 = vmatpush.msra.mxu0 0.0
    %1766 = vmatpush.msra.mxu0 0.0
    %1767 = vmatpush.msra.mxu0 0.0
    %1768 = vmatpush.msra.mxu0 0.0
    %1769 = vmatpush.msra.mxu0 0.0
    %1770 = vmatpush.msra.mxu0 0.0
    %1771 = vmatpush.msra.mxu0 0.0
    %1772 = vmatpush.msra.mxu0 0.0
    %1773 = vmatpush.msra.mxu0 0.0
    %1774 = vmatpush.msra.mxu0 0.0
    %1775 = vmatpush.msra.mxu0 %v1472
    %1776 = vmatpush.msra.mxu0 %v1463
    %1777 = vmatpush.msra.mxu0 %v1462
    %1778 = vmatmul.f32.gmra.mxu0 %v1760
    %v1779 = vpop.f32.mrf.mxu0
    %v1780 = vadd.f32 0.0, %v1779
    %1781 = vdwg.mxu0
    %s1782 = scalar_lea.vmem %s7, 320
    %v1783 = vld [vmem:[%s1782] sm:$0xff]
    %v1784 = vld [vmem:[%s1782 + $0x8] sm:$0xff]
    %v1785 = vld [vmem:[%s1782 + $0x10] sm:$0xff]
    %v1786 = vld [vmem:[%s1782 + $0x18] sm:$0xff]
    %v1787 = vld [vmem:[%s1782 + $0x20] sm:$0xff]
    %v1788 = vld [vmem:[%s1782 + $0x28] sm:$0xff]
    %v1789 = vld [vmem:[%s1782 + $0x30] sm:$0xff]
    %v1790 = vld [vmem:[%s1782 + $0x38] sm:$0xff]
    %v1792 = vsel %vm1536, %v1780, 0
    %1794 = vmatpush.msra.mxu0 0.0
    %1795 = vmatpush.msra.mxu0 0.0
    %1796 = vmatpush.msra.mxu0 0.0
    %1797 = vmatpush.msra.mxu0 0.0
    %1798 = vmatpush.msra.mxu0 0.0
    %1799 = vmatpush.msra.mxu0 0.0
    %1800 = vmatpush.msra.mxu0 0.0
    %1801 = vmatpush.msra.mxu0 0.0
    %1802 = vmatpush.msra.mxu0 %v1790
    %1803 = vmatpush.msra.mxu0 %v1789
    %1804 = vmatpush.msra.mxu0 %v1788
    %1805 = vmatpush.msra.mxu0 %v1787
    %1806 = vmatpush.msra.mxu0 %v1786
    %1807 = vmatpush.msra.mxu0 %v1785
    %1808 = vmatpush.msra.mxu0 %v1784
    %1809 = vmatpush.msra.mxu0 %v1783
    %1810 = vmatmul.f32.gmra.mxu0 %v1792
    %v1811 = vpop.f32.mrf.mxu0
    %v1812 = vadd.f32 0.0, %v1811
    %1813 = vdwg.mxu0
    %v1814 = vadd.f32 %v1756, %v1812
    %s1815 = scalar_lea.vmem %s6, 12
    %v1816 = vld [vmem:[%s1815] sm:$0x3]
    %v1818 = vsel %vm1466, %v1816, 0
    %1820 = vmatpush.msra.mxu0 0.0
    %1821 = vmatpush.msra.mxu0 0.0
    %1822 = vmatpush.msra.mxu0 0.0
    %1823 = vmatpush.msra.mxu0 0.0
    %1824 = vmatpush.msra.mxu0 0.0
    %1825 = vmatpush.msra.mxu0 0.0
    %1826 = vmatpush.msra.mxu0 0.0
    %1827 = vmatpush.msra.mxu0 0.0
    %1828 = vmatpush.msra.mxu0 0.0
    %1829 = vmatpush.msra.mxu0 0.0
    %1830 = vmatpush.msra.mxu0 0.0
    %1831 = vmatpush.msra.mxu0 0.0
    %1832 = vmatpush.msra.mxu0 0.0
    %1833 = vmatpush.msra.mxu0 %v1472
    %1834 = vmatpush.msra.mxu0 %v1463
    %1835 = vmatpush.msra.mxu0 %v1462
    %1836 = vmatmul.f32.gmra.mxu0 %v1818
    %v1837 = vpop.f32.mrf.mxu0
    %v1838 = vadd.f32 0.0, %v1837
    %1839 = vdwg.mxu0
    %s1840 = scalar_lea.vmem %s7, 384
    %v1841 = vld [vmem:[%s1840] sm:$0xff]
    %v1842 = vld [vmem:[%s1840 + $0x8] sm:$0xff]
    %v1843 = vld [vmem:[%s1840 + $0x10] sm:$0xff]
    %v1844 = vld [vmem:[%s1840 + $0x18] sm:$0xff]
    %v1845 = vld [vmem:[%s1840 + $0x20] sm:$0xff]
    %v1846 = vld [vmem:[%s1840 + $0x28] sm:$0xff]
    %v1847 = vld [vmem:[%s1840 + $0x30] sm:$0xff]
    %v1848 = vld [vmem:[%s1840 + $0x38] sm:$0xff]
    %v1850 = vsel %vm1536, %v1838, 0
    %1852 = vmatpush.msra.mxu0 0.0
    %1853 = vmatpush.msra.mxu0 0.0
    %1854 = vmatpush.msra.mxu0 0.0
    %1855 = vmatpush.msra.mxu0 0.0
    %1856 = vmatpush.msra.mxu0 0.0
    %1857 = vmatpush.msra.mxu0 0.0
    %1858 = vmatpush.msra.mxu0 0.0
    %1859 = vmatpush.msra.mxu0 0.0
    %1860 = vmatpush.msra.mxu0 %v1848
    %1861 = vmatpush.msra.mxu0 %v1847
    %1862 = vmatpush.msra.mxu0 %v1846
    %1863 = vmatpush.msra.mxu0 %v1845
    %1864 = vmatpush.msra.mxu0 %v1844
    %1865 = vmatpush.msra.mxu0 %v1843
    %1866 = vmatpush.msra.mxu0 %v1842
    %1867 = vmatpush.msra.mxu0 %v1841
    %1868 = vmatmul.f32.gmra.mxu0 %v1850
    %v1869 = vpop.f32.mrf.mxu0
    %v1870 = vadd.f32 0.0, %v1869
    %1871 = vdwg.mxu0
    %v1872 = vadd.f32 %v1814, %v1870
    %s1873 = scalar_lea.vmem %s6, 14
    %v1874 = vld [vmem:[%s1873] sm:$0x3]
    %v1876 = vsel %vm1466, %v1874, 0
    %1878 = vmatpush.msra.mxu0 0.0
    %1879 = vmatpush.msra.mxu0 0.0
    %1880 = vmatpush.msra.mxu0 0.0
    %1881 = vmatpush.msra.mxu0 0.0
    %1882 = vmatpush.msra.mxu0 0.0
    %1883 = vmatpush.msra.mxu0 0.0
    %1884 = vmatpush.msra.mxu0 0.0
    %1885 = vmatpush.msra.mxu0 0.0
    %1886 = vmatpush.msra.mxu0 0.0
    %1887 = vmatpush.msra.mxu0 0.0
    %1888 = vmatpush.msra.mxu0 0.0
    %1889 = vmatpush.msra.mxu0 0.0
    %1890 = vmatpush.msra.mxu0 0.0
    %1891 = vmatpush.msra.mxu0 %v1472
    %1892 = vmatpush.msra.mxu0 %v1463
    %1893 = vmatpush.msra.mxu0 %v1462
    %1894 = vmatmul.f32.gmra.mxu0 %v1876
    %v1895 = vpop.f32.mrf.mxu0
    %v1896 = vadd.f32 0.0, %v1895
    %1897 = vdwg.mxu0
    %s1898 = scalar_lea.vmem %s7, 448
    %v1899 = vld [vmem:[%s1898] sm:$0xff]
    %v1900 = vld [vmem:[%s1898 + $0x8] sm:$0xff]
    %v1901 = vld [vmem:[%s1898 + $0x10] sm:$0xff]
    %v1902 = vld [vmem:[%s1898 + $0x18] sm:$0xff]
    %v1903 = vld [vmem:[%s1898 + $0x20] sm:$0xff]
    %v1904 = vld [vmem:[%s1898 + $0x28] sm:$0xff]
    %v1905 = vld [vmem:[%s1898 + $0x30] sm:$0xff]
    %v1906 = vld [vmem:[%s1898 + $0x38] sm:$0xff]
    %v1908 = vsel %vm1536, %v1896, 0
    %1910 = vmatpush.msra.mxu0 0.0
    %1911 = vmatpush.msra.mxu0 0.0
    %1912 = vmatpush.msra.mxu0 0.0
    %1913 = vmatpush.msra.mxu0 0.0
    %1914 = vmatpush.msra.mxu0 0.0
    %1915 = vmatpush.msra.mxu0 0.0
    %1916 = vmatpush.msra.mxu0 0.0
    %1917 = vmatpush.msra.mxu0 0.0
    %1918 = vmatpush.msra.mxu0 %v1906
    %1919 = vmatpush.msra.mxu0 %v1905
    %1920 = vmatpush.msra.mxu0 %v1904
    %1921 = vmatpush.msra.mxu0 %v1903
    %1922 = vmatpush.msra.mxu0 %v1902
    %1923 = vmatpush.msra.mxu0 %v1901
    %1924 = vmatpush.msra.mxu0 %v1900
    %1925 = vmatpush.msra.mxu0 %v1899
    %1926 = vmatmul.f32.gmra.mxu0 %v1908
    %v1927 = vpop.f32.mrf.mxu0
    %v1928 = vadd.f32 0.0, %v1927
    %1929 = vdwg.mxu0
    %v1930 = vadd.f32 %v1872, %v1928
    %s1931 = scalar_lea.vmem %s6, 16
    %v1932 = vld [vmem:[%s1931] sm:$0x3]
    %v1934 = vsel %vm1466, %v1932, 0
    %1936 = vmatpush.msra.mxu0 0.0
    %1937 = vmatpush.msra.mxu0 0.0
    %1938 = vmatpush.msra.mxu0 0.0
    %1939 = vmatpush.msra.mxu0 0.0
    %1940 = vmatpush.msra.mxu0 0.0
    %1941 = vmatpush.msra.mxu0 0.0
    %1942 = vmatpush.msra.mxu0 0.0
    %1943 = vmatpush.msra.mxu0 0.0
    %1944 = vmatpush.msra.mxu0 0.0
    %1945 = vmatpush.msra.mxu0 0.0
    %1946 = vmatpush.msra.mxu0 0.0
    %1947 = vmatpush.msra.mxu0 0.0
    %1948 = vmatpush.msra.mxu0 0.0
    %1949 = vmatpush.msra.mxu0 %v1472
    %1950 = vmatpush.msra.mxu0 %v1463
    %1951 = vmatpush.msra.mxu0 %v1462
    %1952 = vmatmul.f32.gmra.mxu0 %v1934
    %v1953 = vpop.f32.mrf.mxu0
    %v1954 = vadd.f32 0.0, %v1953
    %1955 = vdwg.mxu0
    %s1956 = scalar_lea.vmem %s7, 512
    %v1957 = vld [vmem:[%s1956] sm:$0xff]
    %v1958 = vld [vmem:[%s1956 + $0x8] sm:$0xff]
    %v1959 = vld [vmem:[%s1956 + $0x10] sm:$0xff]
    %v1960 = vld [vmem:[%s1956 + $0x18] sm:$0xff]
    %v1961 = vld [vmem:[%s1956 + $0x20] sm:$0xff]
    %v1962 = vld [vmem:[%s1956 + $0x28] sm:$0xff]
    %v1963 = vld [vmem:[%s1956 + $0x30] sm:$0xff]
    %v1964 = vld [vmem:[%s1956 + $0x38] sm:$0xff]
    %v1966 = vsel %vm1536, %v1954, 0
    %1968 = vmatpush.msra.mxu0 0.0
    %1969 = vmatpush.msra.mxu0 0.0
    %1970 = vmatpush.msra.mxu0 0.0
    %1971 = vmatpush.msra.mxu0 0.0
    %1972 = vmatpush.msra.mxu0 0.0
    %1973 = vmatpush.msra.mxu0 0.0
    %1974 = vmatpush.msra.mxu0 0.0
    %1975 = vmatpush.msra.mxu0 0.0
    %1976 = vmatpush.msra.mxu0 %v1964
    %1977 = vmatpush.msra.mxu0 %v1963
    %1978 = vmatpush.msra.mxu0 %v1962
    %1979 = vmatpush.msra.mxu0 %v1961
    %1980 = vmatpush.msra.mxu0 %v1960
    %1981 = vmatpush.msra.mxu0 %v1959
    %1982 = vmatpush.msra.mxu0 %v1958
    %1983 = vmatpush.msra.mxu0 %v1957
    %1984 = vmatmul.f32.gmra.mxu0 %v1966
    %v1985 = vpop.f32.mrf.mxu0
    %v1986 = vadd.f32 0.0, %v1985
    %1987 = vdwg.mxu0
    %v1988 = vadd.f32 %v1930, %v1986
    %v1989 = vld [vmem:[%s8] sm:$0x1]
    %v1991 = vperm.slane %v1989, 0
    %v1993 = vadd.f32 %v1988, %v1991
    %vm1994 = vcmp.ge.f32.partialorder %v1993, 0.0
    %v1995 = vmul.f32 %v1993, 0.01
    %v1996 = vsel %vm1994, %v1993, %v1995
    %v1997 = vld [vmem:[%s9] sm:$0x3]
    %vm1998 = vcmask 15360
    %v2000 = vsel %vm1998, %v1997, 0
    %v2003 = vsel %vm1470, %v1996, 0
    %2005 = vmatpush.msra.mxu0 0.0
    %2006 = vmatpush.msra.mxu0 0.0
    %2007 = vmatpush.msra.mxu0 0.0
    %2008 = vmatpush.msra.mxu0 0.0
    %2009 = vmatpush.msra.mxu0 0.0
    %2010 = vmatpush.msra.mxu0 0.0
    %2011 = vmatpush.msra.mxu0 0.0
    %2012 = vmatpush.msra.mxu0 0.0
    %2013 = vmatpush.msra.mxu0 0.0
    %2014 = vmatpush.msra.mxu0 0.0
    %2015 = vmatpush.msra.mxu0 0.0
    %2016 = vmatpush.msra.mxu0 0.0
    %2017 = vmatpush.msra.mxu0 0.0
    %2018 = vmatpush.msra.mxu0 0.0
    %2019 = vmatpush.msra.mxu0 0.0
    %2020 = vmatpush.msra.mxu0 %v2003
    %2021 = vmatmul.f32.gmra.mxu0 %v2000
    %v2022 = vpop.f32.mrf.mxu0
    %v2023 = vadd.f32 0.0, %v2022
    %2024 = vdwg.mxu0
    %v2025 = vld [vmem:[%s10] sm:$0xff]
    %v2026 = vld [vmem:[%s10 + $0x8] sm:$0xff]
    %v2027 = vld [vmem:[%s10 + $0x10] sm:$0xff]
    %v2028 = vld [vmem:[%s10 + $0x18] sm:$0xff]
    %v2029 = vld [vmem:[%s10 + $0x20] sm:$0xff]
    %v2030 = vld [vmem:[%s10 + $0x28] sm:$0xff]
    %v2031 = vld [vmem:[%s10 + $0x30] sm:$0xff]
    %v2032 = vld [vmem:[%s10 + $0x38] sm:$0xff]
    %v2033 = vld [vmem:[%s11] sm:$0x1]
    %v2035 = vperm.slane %v2033, 0
    %v2038 = vsel %vm1536, %v2023, 0
    %2040 = vmatpush.msra.mxu0 0.0
    %2041 = vmatpush.msra.mxu0 0.0
    %2042 = vmatpush.msra.mxu0 0.0
    %2043 = vmatpush.msra.mxu0 0.0
    %2044 = vmatpush.msra.mxu0 0.0
    %2045 = vmatpush.msra.mxu0 0.0
    %2046 = vmatpush.msra.mxu0 0.0
    %2047 = vmatpush.msra.mxu0 0.0
    %2048 = vmatpush.msra.mxu0 %v2032
    %2049 = vmatpush.msra.mxu0 %v2031
    %2050 = vmatpush.msra.mxu0 %v2030
    %2051 = vmatpush.msra.mxu0 %v2029
    %2052 = vmatpush.msra.mxu0 %v2028
    %2053 = vmatpush.msra.mxu0 %v2027
    %2054 = vmatpush.msra.mxu0 %v2026
    %2055 = vmatpush.msra.mxu0 %v2025
    %2056 = vmatmul.f32.gmra.mxu0 %v2038
    %v2057 = vpop.f32.mrf.mxu0
    %v2058 = vadd.f32 %v2035, %v2057
    %2059 = vdwg.mxu0
    %vm2060 = vcmask 254976
    %2061 = vst.msk [vmem:[#allocation2] sm:$0x3] %vm2060, %v2058
    // Predicated region
    $region50: #{forward.1} parent=1 // pred_check
      _
    $region51: #{forward.1} parent=1 // pred_check_branch
      %2063 = sbr.rel (0) target = $region53
    $region52: #{forward.1} parent=1 // pred_region
      %2065 = vsyncadd [#allocation3], 0
      %s2067 = sshll.u32 [#allocation2], 4
      %s2068 = int_to_ptr.vmem [resolvable:$true] %s2067
      %s2069 = sshll.u32 %s12, 4
      %s2070 = int_to_ptr.hbm [resolvable:$true] %s2069
      %2072 = dma.vmem_to_hbm [thread:$0]  %s2068, 32, %s2070, [#allocation3]
    $region53: #{forward.1} parent=1 // pred_fallthru
      _
    // Predicated region
    $region54: #{forward.1} parent=1 // pred_check
      _
    $region55: #{forward.1} parent=1 // pred_check_branch
      %2074 = sbr.rel (0) target = $region57
    $region56: #{forward.1} parent=1 // pred_region
      %2076 = dma.done [#allocation3], 32
    $region57: #{forward.1} parent=1 // pred_fallthru
      _
    %2077 = vsyncpa [#allocation3], 1

</llo_original>
